<compile_context>
chip_gen: v7x
topology: tpu7x:2x2x1
jax: 0.10.0
libtpu: 0.0.40
codegen_flags: <defaults>
</compile_context>

<pallas_src>
import functools
import math

import jax
import jax.numpy as jnp
from jax.experimental import pallas as pl
from jax.experimental.pallas import tpu as pltpu

D_MODEL = 300


def _round_up(x, m):
    return ((x + m - 1) // m) * m


def _choose_block_batches(batch, seq):
    """Pick batches-per-grid-step: target >=256 rows per block, but keep at
    least 2 grid steps when batch >= 2 so v7x's two TensorCores both work."""
    target_rows = 256
    bt = max(1, min(batch, max(1, target_rows // max(seq, 1))))
    if batch >= 2:
        bt = min(bt, max(1, batch // 2))
    while batch % bt != 0:
        bt -= 1
    return bt


# ---------------------------------------------------------------------------
# Fused kernel: one grid step == Bt batch elements.
# ---------------------------------------------------------------------------
def _mha_fused_kernel(x_ref, wqkv_ref, bqkv_ref, wfin_ref, bfin_ref, o_ref,
                      merged_ref, *, heads, dims, bt, seq):
    d_model = x_ref.shape[-1]
    m = bt * seq
    hd = heads * dims

    # --- fused QKV projection over all Bt*S rows (fills MXU rows) -----------
    x = x_ref[...].reshape(m, d_model).astype(jnp.bfloat16)
    qkv = jnp.dot(x, wqkv_ref[...], preferred_element_type=jnp.float32)
    qkv = qkv + bqkv_ref[...]                               # (M, QKV_PAD) f32

    # --- per-head scaled-dot-product attention (softmax math in f32) --------
    # Columns of qkv are laid out [Q h0..hH | K h0..hH | V h0..hH | zero pad]
    # (one-time reorder at init), so each q/k/v is a contiguous static slice.
    for h in range(heads):
        q = qkv[:, h * dims:(h + 1) * dims]
        k = qkv[:, hd + h * dims: hd + (h + 1) * dims]
        v = qkv[:, 2 * hd + h * dims: 2 * hd + (h + 1) * dims]

        qb = q.reshape(bt, seq, dims).astype(jnp.bfloat16)
        kb = k.reshape(bt, seq, dims).astype(jnp.bfloat16)
        vb = v.reshape(bt, seq, dims).astype(jnp.bfloat16)

        # QK^T per batch element; 1/sqrt(dims) already folded into Q weights.
        s = jnp.einsum('bqd,bkd->bqk', qb, kb,
                       preferred_element_type=jnp.float32)   # (Bt, S, S)

        # softmax over the key axis
        s = s - jnp.max(s, axis=-1, keepdims=True)
        e = jnp.exp(s)
        denom = jnp.sum(e, axis=-1, keepdims=True)
        p = (e * pl.reciprocal(denom, approx=True)).astype(jnp.bfloat16)

        pv = jnp.einsum('bqk,bkd->bqd', p, vb,
                        preferred_element_type=jnp.float32)   # (Bt, S, D)

        # Write this head's output into the merged scratch at a static lane
        # offset (replaces the jnp.concatenate lane-shuffle chain).
        merged_ref[:, h * dims:(h + 1) * dims] = (
            pv.reshape(m, dims).astype(jnp.bfloat16))

    # --- final linear --------------------------------------------------------
    z = jnp.dot(merged_ref[...], wfin_ref[...],
                preferred_element_type=jnp.float32) + bfin_ref[...]
    o_ref[...] = z.reshape(bt, seq, d_model)


# ---------------------------------------------------------------------------
# Module
# ---------------------------------------------------------------------------
class MultiHeadAttentionPallas:
    def __init__(self, heads, seq_len, dimensions, key):
        self.heads = heads
        self.seq_len = seq_len
        self.dimensions = dimensions

        qkv_out = dimensions * heads * 3
        hd = heads * dimensions
        self.qkv_pad = _round_up(qkv_out, 128)               # 192 -> 256

        k1, k2, k3, k4 = jax.random.split(key, 4)
        # nn.Linear default init: U(-1/sqrt(fan_in), 1/sqrt(fan_in)).
        bound_qkv = 1.0 / math.sqrt(D_MODEL)
        bound_fin = 1.0 / math.sqrt(hd)

        w_qkv = jax.random.uniform(
            k1, (D_MODEL, qkv_out), jnp.float32, -bound_qkv, bound_qkv)
        b_qkv = jax.random.uniform(
            k2, (qkv_out,), jnp.float32, -bound_qkv, bound_qkv)
        w_fin = jax.random.uniform(
            k3, (hd, D_MODEL), jnp.float32, -bound_fin, bound_fin)
        b_fin = jax.random.uniform(
            k4, (D_MODEL,), jnp.float32, -bound_fin, bound_fin)

        # One-time column reorder (head, which, dim) -> (which, head, dim) so
        # Q/K/V per head are contiguous static lane slices inside the kernel.
        w_qkv_k = jnp.transpose(
            w_qkv.reshape(D_MODEL, heads, 3, dimensions),
            (0, 2, 1, 3)).reshape(D_MODEL, qkv_out)
        b_qkv_k = jnp.transpose(
            b_qkv.reshape(heads, 3, dimensions), (1, 0, 2)).reshape(qkv_out)

        # Fold the softmax 1/sqrt(dims) scale into the Q columns (one-time,
        # host side) so the kernel has no per-head scale multiply.
        inv_scale = 1.0 / math.sqrt(float(dimensions))
        col_scale = jnp.concatenate(
            [jnp.full((hd,), inv_scale, jnp.float32),
             jnp.ones((2 * hd,), jnp.float32)])
        w_qkv_k = w_qkv_k * col_scale[None, :]
        b_qkv_k = b_qkv_k * col_scale

        # One-time zero-padding of the qkv output width to a lane multiple;
        # weights stored in bf16 (halves weight DMA, full-rate MXU),
        # biases kept f32 (added after f32 accumulation).
        self.w_qkv = (jnp.zeros((D_MODEL, self.qkv_pad), jnp.float32)
                      .at[:, :qkv_out].set(w_qkv_k)).astype(jnp.bfloat16)
        self.b_qkv = (jnp.zeros((1, self.qkv_pad), jnp.float32)
                      .at[0, :qkv_out].set(b_qkv_k))
        self.w_fin = w_fin.astype(jnp.bfloat16)
        self.b_fin = b_fin.reshape(1, D_MODEL)

    def __call__(self, x, mask=None):
        if mask is not None:
            # TODO(synk): mask path (qk[mask == 1] = -inf) not implemented;
            # the reference default call uses mask=None.
            raise NotImplementedError("mask is not supported")

        B, S, dm = x.shape
        assert S == self.seq_len and dm == D_MODEL
        H, D = self.heads, self.dimensions
        hd = H * D

        bt = _choose_block_batches(B, S)
        n_blocks = B // bt
        m = bt * S

        # Advisory cost estimate so XLA schedules surrounding ops sensibly.
        flops = int(2 * B * S * D_MODEL * self.qkv_pad
                    + 4 * B * H * S * S * D
                    + 2 * B * S * hd * D_MODEL)
        bytes_accessed = int(B * S * D_MODEL * (4 + 4)          # x in + out
                             + self.w_qkv.size * 2 + self.w_fin.size * 2
                             + self.b_qkv.size * 4 + self.b_fin.size * 4)
        transcendentals = int(B * H * S * S)

        kern = functools.partial(_mha_fused_kernel,
                                 heads=H, dims=D, bt=bt, seq=S)

        return pl.pallas_call(
            kern,
            out_shape=jax.ShapeDtypeStruct((B, S, D_MODEL), jnp.float32),
            grid=(n_blocks,),
            in_specs=[
                pl.BlockSpec((bt, S, D_MODEL), lambda b: (b, 0, 0)),     # x
                pl.BlockSpec((D_MODEL, self.qkv_pad), lambda b: (0, 0)), # w_qkv
                pl.BlockSpec((1, self.qkv_pad), lambda b: (0, 0)),       # b_qkv
                pl.BlockSpec((hd, D_MODEL), lambda b: (0, 0)),           # w_fin
                pl.BlockSpec((1, D_MODEL), lambda b: (0, 0)),            # b_fin
            ],
            out_specs=pl.BlockSpec((bt, S, D_MODEL), lambda b: (b, 0, 0)),
            scratch_shapes=[pltpu.VMEM((m, hd), jnp.bfloat16)],          # merged heads
            compiler_params=pltpu.CompilerParams(
                dimension_semantics=("parallel",)),
            cost_estimate=pl.CostEstimate(flops=flops,
                                          transcendentals=transcendentals,
                                          bytes_accessed=bytes_accessed),
        )(x, self.w_qkv, self.b_qkv, self.w_fin, self.b_fin)


if __name__ == "__main__":
    key = jax.random.PRNGKey(0)
    k_param, k_x = jax.random.split(key)

    batch, heads, seq_len, dims = 2, 4, 8, 16
    mha = MultiHeadAttentionPallas(heads, seq_len, dims, k_param)

    x = jax.random.normal(k_x, (batch, seq_len, D_MODEL), jnp.float32)
    out = mha(x)
    out = jax.block_until_ready(out)
    assert out.shape == (batch, seq_len, D_MODEL)
    assert bool(jnp.all(jnp.isfinite(out)))
    print("KERNEL_OK")
</pallas_src>

<mosaic_0001>
module attributes {stable_mosaic.version = 11 : i64} {
  func.func @_mha_fused_kernel(%arg0: i32, %arg1: memref<1x8x300xf32, #tpu.memory_space<vmem>>, %arg2: memref<300x256xbf16, #tpu.memory_space<vmem>>, %arg3: memref<1x256xf32, #tpu.memory_space<vmem>>, %arg4: memref<64x300xbf16, #tpu.memory_space<vmem>>, %arg5: memref<1x300xf32, #tpu.memory_space<vmem>>, %arg6: memref<1x8x300xf32, #tpu.memory_space<vmem>>, %arg7: memref<8x64xbf16, #tpu.memory_space<vmem>>) attributes {dimension_semantics = [#tpu.dimension_semantics<parallel>], iteration_bounds = array<i64: 2>, scalar_prefetch = 0 : i64, scratch_operands = 1 : i64, tpu.core_type = #tpu.core_type<tc>, window_params = [{transform_indices = @transform_0, window_bounds = array<i64: 1, 8, 300>}, {pipeline_mode = #tpu.pipeline_mode<synchronous>, transform_indices = @transform_1, window_bounds = array<i64: 300, 256>}, {pipeline_mode = #tpu.pipeline_mode<synchronous>, transform_indices = @transform_2, window_bounds = array<i64: 1, 256>}, {pipeline_mode = #tpu.pipeline_mode<synchronous>, transform_indices = @transform_3, window_bounds = array<i64: 64, 300>}, {pipeline_mode = #tpu.pipeline_mode<synchronous>, transform_indices = @transform_4, window_bounds = array<i64: 1, 300>}, {transform_indices = @transform_5, window_bounds = array<i64: 1, 8, 300>}]} {
    %c0 = arith.constant 0 : index
    %c0_0 = arith.constant 0 : index
    %c0_1 = arith.constant 0 : index
    %0 = vector.load %arg1[%c0, %c0_0, %c0_1] : memref<1x8x300xf32, #tpu.memory_space<vmem>>, vector<1x8x300xf32>
    %1 = vector.shape_cast %0 : vector<1x8x300xf32> to vector<8x300xf32>
    %2 = arith.truncf %1 : vector<8x300xf32> to vector<8x300xbf16>
    %c0_2 = arith.constant 0 : index
    %c0_3 = arith.constant 0 : index
    %3 = vector.load %arg2[%c0_2, %c0_3] : memref<300x256xbf16, #tpu.memory_space<vmem>>, vector<300x256xbf16>
    %cst = arith.constant dense<0.000000e+00> : vector<8x256xf32>
    %4 = tpu.matmul %2, %3, %cst {dimension_numbers = #tpu.dot_dimension_numbers<[1], [0], [0], [1], [0, 0, 1, 1], [], []>} : vector<8x300xbf16>, vector<300x256xbf16>, vector<8x256xf32> -> vector<8x256xf32>
    %c0_4 = arith.constant 0 : index
    %c0_5 = arith.constant 0 : index
    %5 = vector.load %arg3[%c0_4, %c0_5] : memref<1x256xf32, #tpu.memory_space<vmem>>, vector<1x256xf32>
    %6 = vector.broadcast %5 : vector<1x256xf32> to vector<8x256xf32>
    %7 = arith.addf %4, %6 : vector<8x256xf32>
    %8 = vector.extract_strided_slice %7 {offsets = [0, 0], sizes = [8, 16], strides = [1, 1]} : vector<8x256xf32> to vector<8x16xf32>
    %9 = vector.extract_strided_slice %7 {offsets = [0, 64], sizes = [8, 16], strides = [1, 1]} : vector<8x256xf32> to vector<8x16xf32>
    %10 = vector.extract_strided_slice %7 {offsets = [0, 128], sizes = [8, 16], strides = [1, 1]} : vector<8x256xf32> to vector<8x16xf32>
    %11 = vector.shape_cast %8 : vector<8x16xf32> to vector<1x8x16xf32>
    %12 = arith.truncf %11 : vector<1x8x16xf32> to vector<1x8x16xbf16>
    %13 = vector.shape_cast %9 : vector<8x16xf32> to vector<1x8x16xf32>
    %14 = arith.truncf %13 : vector<1x8x16xf32> to vector<1x8x16xbf16>
    %15 = vector.shape_cast %10 : vector<8x16xf32> to vector<1x8x16xf32>
    %16 = arith.truncf %15 : vector<1x8x16xf32> to vector<1x8x16xbf16>
    "tpu.trace_start"() <{level = 10 : i32, message = "bqd,bkd->bqk"}> : () -> ()
    %cst_6 = arith.constant dense<0.000000e+00> : vector<1x8x8xf32>
    %17 = tpu.matmul %12, %14, %cst_6 {dimension_numbers = #tpu.dot_dimension_numbers<[2], [2], [1], [1], [0, 0, 0, 1, 1, 1], [0], [0]>} : vector<1x8x16xbf16>, vector<1x8x16xbf16>, vector<1x8x8xf32> -> vector<1x8x8xf32>
    "tpu.trace_stop"() : () -> ()
    %cst_7 = arith.constant dense<0xFF800000> : vector<1x8xf32>
    %18 = vector.multi_reduction <maximumf>, %17, %cst_7 [2] : vector<1x8x8xf32> to vector<1x8xf32>
    %19 = vector.shape_cast %18 : vector<1x8xf32> to vector<1x8x1xf32>
    %20 = vector.broadcast %19 : vector<1x8x1xf32> to vector<1x8x8xf32>
    %21 = arith.subf %17, %20 : vector<1x8x8xf32>
    %22 = math.exp %21 : vector<1x8x8xf32>
    %cst_8 = arith.constant dense<0.000000e+00> : vector<1x8xf32>
    %23 = vector.multi_reduction <add>, %22, %cst_8 [2] : vector<1x8x8xf32> to vector<1x8xf32>
    %24 = vector.shape_cast %23 : vector<1x8xf32> to vector<1x8x1xf32>
    %25 = tpu.reciprocal %24 {approx = true} : vector<1x8x1xf32> -> vector<1x8x1xf32>
    %26 = vector.broadcast %25 : vector<1x8x1xf32> to vector<1x8x8xf32>
    %27 = arith.mulf %22, %26 : vector<1x8x8xf32>
    %28 = arith.truncf %27 : vector<1x8x8xf32> to vector<1x8x8xbf16>
    "tpu.trace_start"() <{level = 10 : i32, message = "bqk,bkd->bqd"}> : () -> ()
    %cst_9 = arith.constant dense<0.000000e+00> : vector<1x8x16xf32>
    %29 = tpu.matmul %28, %16, %cst_9 {dimension_numbers = #tpu.dot_dimension_numbers<[2], [1], [1], [2], [0, 0, 0, 1, 1, 2], [0], [0]>} : vector<1x8x8xbf16>, vector<1x8x16xbf16>, vector<1x8x16xf32> -> vector<1x8x16xf32>
    "tpu.trace_stop"() : () -> ()
    %30 = vector.shape_cast %29 : vector<1x8x16xf32> to vector<8x16xf32>
    %31 = arith.truncf %30 : vector<8x16xf32> to vector<8x16xbf16>
    %c0_10 = arith.constant 0 : index
    %c0_11 = arith.constant 0 : index
    %32 = vector.load %arg7[%c0_10, %c0_11] : memref<8x64xbf16, #tpu.memory_space<vmem>>, vector<8x16xbf16>
    tpu.vector_store %arg7[%c0_10, %c0_11], %31 {strides = array<i32>} : memref<8x64xbf16, #tpu.memory_space<vmem>>, vector<8x16xbf16>,
    %33 = vector.extract_strided_slice %7 {offsets = [0, 16], sizes = [8, 16], strides = [1, 1]} : vector<8x256xf32> to vector<8x16xf32>
    %34 = vector.extract_strided_slice %7 {offsets = [0, 80], sizes = [8, 16], strides = [1, 1]} : vector<8x256xf32> to vector<8x16xf32>
    %35 = vector.extract_strided_slice %7 {offsets = [0, 144], sizes = [8, 16], strides = [1, 1]} : vector<8x256xf32> to vector<8x16xf32>
    %36 = vector.shape_cast %33 : vector<8x16xf32> to vector<1x8x16xf32>
    %37 = arith.truncf %36 : vector<1x8x16xf32> to vector<1x8x16xbf16>
    %38 = vector.shape_cast %34 : vector<8x16xf32> to vector<1x8x16xf32>
    %39 = arith.truncf %38 : vector<1x8x16xf32> to vector<1x8x16xbf16>
    %40 = vector.shape_cast %35 : vector<8x16xf32> to vector<1x8x16xf32>
    %41 = arith.truncf %40 : vector<1x8x16xf32> to vector<1x8x16xbf16>
    "tpu.trace_start"() <{level = 10 : i32, message = "bqd,bkd->bqk"}> : () -> ()
    %cst_12 = arith.constant dense<0.000000e+00> : vector<1x8x8xf32>
    %42 = tpu.matmul %37, %39, %cst_12 {dimension_numbers = #tpu.dot_dimension_numbers<[2], [2], [1], [1], [0, 0, 0, 1, 1, 1], [0], [0]>} : vector<1x8x16xbf16>, vector<1x8x16xbf16>, vector<1x8x8xf32> -> vector<1x8x8xf32>
    "tpu.trace_stop"() : () -> ()
    %cst_13 = arith.constant dense<0xFF800000> : vector<1x8xf32>
    %43 = vector.multi_reduction <maximumf>, %42, %cst_13 [2] : vector<1x8x8xf32> to vector<1x8xf32>
    %44 = vector.shape_cast %43 : vector<1x8xf32> to vector<1x8x1xf32>
    %45 = vector.broadcast %44 : vector<1x8x1xf32> to vector<1x8x8xf32>
    %46 = arith.subf %42, %45 : vector<1x8x8xf32>
    %47 = math.exp %46 : vector<1x8x8xf32>
    %cst_14 = arith.constant dense<0.000000e+00> : vector<1x8xf32>
    %48 = vector.multi_reduction <add>, %47, %cst_14 [2] : vector<1x8x8xf32> to vector<1x8xf32>
    %49 = vector.shape_cast %48 : vector<1x8xf32> to vector<1x8x1xf32>
    %50 = tpu.reciprocal %49 {approx = true} : vector<1x8x1xf32> -> vector<1x8x1xf32>
    %51 = vector.broadcast %50 : vector<1x8x1xf32> to vector<1x8x8xf32>
    %52 = arith.mulf %47, %51 : vector<1x8x8xf32>
    %53 = arith.truncf %52 : vector<1x8x8xf32> to vector<1x8x8xbf16>
    "tpu.trace_start"() <{level = 10 : i32, message = "bqk,bkd->bqd"}> : () -> ()
    %cst_15 = arith.constant dense<0.000000e+00> : vector<1x8x16xf32>
    %54 = tpu.matmul %53, %41, %cst_15 {dimension_numbers = #tpu.dot_dimension_numbers<[2], [1], [1], [2], [0, 0, 0, 1, 1, 2], [0], [0]>} : vector<1x8x8xbf16>, vector<1x8x16xbf16>, vector<1x8x16xf32> -> vector<1x8x16xf32>
    "tpu.trace_stop"() : () -> ()
    %55 = vector.shape_cast %54 : vector<1x8x16xf32> to vector<8x16xf32>
    %56 = arith.truncf %55 : vector<8x16xf32> to vector<8x16xbf16>
    %c0_16 = arith.constant 0 : index
    %c16 = arith.constant 16 : index
    %57 = vector.load %arg7[%c0_16, %c16] : memref<8x64xbf16, #tpu.memory_space<vmem>>, vector<8x16xbf16>
    tpu.vector_store %arg7[%c0_16, %c16], %56 {strides = array<i32>} : memref<8x64xbf16, #tpu.memory_space<vmem>>, vector<8x16xbf16>,
    %58 = vector.extract_strided_slice %7 {offsets = [0, 32], sizes = [8, 16], strides = [1, 1]} : vector<8x256xf32> to vector<8x16xf32>
    %59 = vector.extract_strided_slice %7 {offsets = [0, 96], sizes = [8, 16], strides = [1, 1]} : vector<8x256xf32> to vector<8x16xf32>
    %60 = vector.extract_strided_slice %7 {offsets = [0, 160], sizes = [8, 16], strides = [1, 1]} : vector<8x256xf32> to vector<8x16xf32>
    %61 = vector.shape_cast %58 : vector<8x16xf32> to vector<1x8x16xf32>
    %62 = arith.truncf %61 : vector<1x8x16xf32> to vector<1x8x16xbf16>
    %63 = vector.shape_cast %59 : vector<8x16xf32> to vector<1x8x16xf32>
    %64 = arith.truncf %63 : vector<1x8x16xf32> to vector<1x8x16xbf16>
    %65 = vector.shape_cast %60 : vector<8x16xf32> to vector<1x8x16xf32>
    %66 = arith.truncf %65 : vector<1x8x16xf32> to vector<1x8x16xbf16>
    "tpu.trace_start"() <{level = 10 : i32, message = "bqd,bkd->bqk"}> : () -> ()
    %cst_17 = arith.constant dense<0.000000e+00> : vector<1x8x8xf32>
    %67 = tpu.matmul %62, %64, %cst_17 {dimension_numbers = #tpu.dot_dimension_numbers<[2], [2], [1], [1], [0, 0, 0, 1, 1, 1], [0], [0]>} : vector<1x8x16xbf16>, vector<1x8x16xbf16>, vector<1x8x8xf32> -> vector<1x8x8xf32>
    "tpu.trace_stop"() : () -> ()
    %cst_18 = arith.constant dense<0xFF800000> : vector<1x8xf32>
    %68 = vector.multi_reduction <maximumf>, %67, %cst_18 [2] : vector<1x8x8xf32> to vector<1x8xf32>
    %69 = vector.shape_cast %68 : vector<1x8xf32> to vector<1x8x1xf32>
    %70 = vector.broadcast %69 : vector<1x8x1xf32> to vector<1x8x8xf32>
    %71 = arith.subf %67, %70 : vector<1x8x8xf32>
    %72 = math.exp %71 : vector<1x8x8xf32>
    %cst_19 = arith.constant dense<0.000000e+00> : vector<1x8xf32>
    %73 = vector.multi_reduction <add>, %72, %cst_19 [2] : vector<1x8x8xf32> to vector<1x8xf32>
    %74 = vector.shape_cast %73 : vector<1x8xf32> to vector<1x8x1xf32>
    %75 = tpu.reciprocal %74 {approx = true} : vector<1x8x1xf32> -> vector<1x8x1xf32>
    %76 = vector.broadcast %75 : vector<1x8x1xf32> to vector<1x8x8xf32>
    %77 = arith.mulf %72, %76 : vector<1x8x8xf32>
    %78 = arith.truncf %77 : vector<1x8x8xf32> to vector<1x8x8xbf16>
    "tpu.trace_start"() <{level = 10 : i32, message = "bqk,bkd->bqd"}> : () -> ()
    %cst_20 = arith.constant dense<0.000000e+00> : vector<1x8x16xf32>
    %79 = tpu.matmul %78, %66, %cst_20 {dimension_numbers = #tpu.dot_dimension_numbers<[2], [1], [1], [2], [0, 0, 0, 1, 1, 2], [0], [0]>} : vector<1x8x8xbf16>, vector<1x8x16xbf16>, vector<1x8x16xf32> -> vector<1x8x16xf32>
    "tpu.trace_stop"() : () -> ()
    %80 = vector.shape_cast %79 : vector<1x8x16xf32> to vector<8x16xf32>
    %81 = arith.truncf %80 : vector<8x16xf32> to vector<8x16xbf16>
    %c0_21 = arith.constant 0 : index
    %c32 = arith.constant 32 : index
    %82 = vector.load %arg7[%c0_21, %c32] : memref<8x64xbf16, #tpu.memory_space<vmem>>, vector<8x16xbf16>
    tpu.vector_store %arg7[%c0_21, %c32], %81 {strides = array<i32>} : memref<8x64xbf16, #tpu.memory_space<vmem>>, vector<8x16xbf16>,
    %83 = vector.extract_strided_slice %7 {offsets = [0, 48], sizes = [8, 16], strides = [1, 1]} : vector<8x256xf32> to vector<8x16xf32>
    %84 = vector.extract_strided_slice %7 {offsets = [0, 112], sizes = [8, 16], strides = [1, 1]} : vector<8x256xf32> to vector<8x16xf32>
    %85 = vector.extract_strided_slice %7 {offsets = [0, 176], sizes = [8, 16], strides = [1, 1]} : vector<8x256xf32> to vector<8x16xf32>
    %86 = vector.shape_cast %83 : vector<8x16xf32> to vector<1x8x16xf32>
    %87 = arith.truncf %86 : vector<1x8x16xf32> to vector<1x8x16xbf16>
    %88 = vector.shape_cast %84 : vector<8x16xf32> to vector<1x8x16xf32>
    %89 = arith.truncf %88 : vector<1x8x16xf32> to vector<1x8x16xbf16>
    %90 = vector.shape_cast %85 : vector<8x16xf32> to vector<1x8x16xf32>
    %91 = arith.truncf %90 : vector<1x8x16xf32> to vector<1x8x16xbf16>
    "tpu.trace_start"() <{level = 10 : i32, message = "bqd,bkd->bqk"}> : () -> ()
    %cst_22 = arith.constant dense<0.000000e+00> : vector<1x8x8xf32>
    %92 = tpu.matmul %87, %89, %cst_22 {dimension_numbers = #tpu.dot_dimension_numbers<[2], [2], [1], [1], [0, 0, 0, 1, 1, 1], [0], [0]>} : vector<1x8x16xbf16>, vector<1x8x16xbf16>, vector<1x8x8xf32> -> vector<1x8x8xf32>
    "tpu.trace_stop"() : () -> ()
    %cst_23 = arith.constant dense<0xFF800000> : vector<1x8xf32>
    %93 = vector.multi_reduction <maximumf>, %92, %cst_23 [2] : vector<1x8x8xf32> to vector<1x8xf32>
    %94 = vector.shape_cast %93 : vector<1x8xf32> to vector<1x8x1xf32>
    %95 = vector.broadcast %94 : vector<1x8x1xf32> to vector<1x8x8xf32>
    %96 = arith.subf %92, %95 : vector<1x8x8xf32>
    %97 = math.exp %96 : vector<1x8x8xf32>
    %cst_24 = arith.constant dense<0.000000e+00> : vector<1x8xf32>
    %98 = vector.multi_reduction <add>, %97, %cst_24 [2] : vector<1x8x8xf32> to vector<1x8xf32>
    %99 = vector.shape_cast %98 : vector<1x8xf32> to vector<1x8x1xf32>
    %100 = tpu.reciprocal %99 {approx = true} : vector<1x8x1xf32> -> vector<1x8x1xf32>
    %101 = vector.broadcast %100 : vector<1x8x1xf32> to vector<1x8x8xf32>
    %102 = arith.mulf %97, %101 : vector<1x8x8xf32>
    %103 = arith.truncf %102 : vector<1x8x8xf32> to vector<1x8x8xbf16>
    "tpu.trace_start"() <{level = 10 : i32, message = "bqk,bkd->bqd"}> : () -> ()
    %cst_25 = arith.constant dense<0.000000e+00> : vector<1x8x16xf32>
    %104 = tpu.matmul %103, %91, %cst_25 {dimension_numbers = #tpu.dot_dimension_numbers<[2], [1], [1], [2], [0, 0, 0, 1, 1, 2], [0], [0]>} : vector<1x8x8xbf16>, vector<1x8x16xbf16>, vector<1x8x16xf32> -> vector<1x8x16xf32>
    "tpu.trace_stop"() : () -> ()
    %105 = vector.shape_cast %104 : vector<1x8x16xf32> to vector<8x16xf32>
    %106 = arith.truncf %105 : vector<8x16xf32> to vector<8x16xbf16>
    %c0_26 = arith.constant 0 : index
    %c48 = arith.constant 48 : index
    %107 = vector.load %arg7[%c0_26, %c48] : memref<8x64xbf16, #tpu.memory_space<vmem>>, vector<8x16xbf16>
    tpu.vector_store %arg7[%c0_26, %c48], %106 {strides = array<i32>} : memref<8x64xbf16, #tpu.memory_space<vmem>>, vector<8x16xbf16>,
    %c0_27 = arith.constant 0 : index
    %c0_28 = arith.constant 0 : index
    %108 = vector.load %arg7[%c0_27, %c0_28] : memref<8x64xbf16, #tpu.memory_space<vmem>>, vector<8x64xbf16>
    %c0_29 = arith.constant 0 : index
    %c0_30 = arith.constant 0 : index
    %109 = vector.load %arg4[%c0_29, %c0_30] : memref<64x300xbf16, #tpu.memory_space<vmem>>, vector<64x300xbf16>
    %cst_31 = arith.constant dense<0.000000e+00> : vector<8x300xf32>
    %110 = tpu.matmul %108, %109, %cst_31 {dimension_numbers = #tpu.dot_dimension_numbers<[1], [0], [0], [1], [0, 0, 1, 1], [], []>} : vector<8x64xbf16>, vector<64x300xbf16>, vector<8x300xf32> -> vector<8x300xf32>
    %c0_32 = arith.constant 0 : index
    %c0_33 = arith.constant 0 : index
    %111 = vector.load %arg5[%c0_32, %c0_33] : memref<1x300xf32, #tpu.memory_space<vmem>>, vector<1x300xf32>
    %112 = vector.broadcast %111 : vector<1x300xf32> to vector<8x300xf32>
    %113 = arith.addf %110, %112 : vector<8x300xf32>
    %114 = vector.shape_cast %113 : vector<8x300xf32> to vector<1x8x300xf32>
    %c0_34 = arith.constant 0 : index
    %c0_35 = arith.constant 0 : index
    %c0_36 = arith.constant 0 : index
    %115 = vector.load %arg6[%c0_34, %c0_35, %c0_36] : memref<1x8x300xf32, #tpu.memory_space<vmem>>, vector<1x8x300xf32>
    tpu.vector_store %arg6[%c0_34, %c0_35, %c0_36], %114 {strides = array<i32>} : memref<1x8x300xf32, #tpu.memory_space<vmem>>, vector<1x8x300xf32>,
    return
  }
  func.func @transform_0(%arg0: i32) -> (i32, i32, i32) {
    %c0_i32 = arith.constant 0 : i32
    %c0_i32_0 = arith.constant 0 : i32
    %c0_i32_1 = arith.constant 0 : i32
    return %arg0, %c0_i32, %c0_i32_0 : i32, i32, i32
  }
  func.func @transform_1(%arg0: i32) -> (i32, i32) {
    %c0_i32 = arith.constant 0 : i32
    %c0_i32_0 = arith.constant 0 : i32
    %c0_i32_1 = arith.constant 0 : i32
    return %c0_i32, %c0_i32_0 : i32, i32
  }
  func.func @transform_2(%arg0: i32) -> (i32, i32) {
    %c0_i32 = arith.constant 0 : i32
    %c0_i32_0 = arith.constant 0 : i32
    %c0_i32_1 = arith.constant 0 : i32
    return %c0_i32, %c0_i32_0 : i32, i32
  }
  func.func @transform_3(%arg0: i32) -> (i32, i32) {
    %c0_i32 = arith.constant 0 : i32
    %c0_i32_0 = arith.constant 0 : i32
    %c0_i32_1 = arith.constant 0 : i32
    return %c0_i32, %c0_i32_0 : i32, i32
  }
  func.func @transform_4(%arg0: i32) -> (i32, i32) {
    %c0_i32 = arith.constant 0 : i32
    %c0_i32_0 = arith.constant 0 : i32
    %c0_i32_1 = arith.constant 0 : i32
    return %c0_i32, %c0_i32_0 : i32, i32
  }
  func.func @transform_5(%arg0: i32) -> (i32, i32, i32) {
    %c0_i32 = arith.constant 0 : i32
    %c0_i32_0 = arith.constant 0 : i32
    %c0_i32_1 = arith.constant 0 : i32
    return %arg0, %c0_i32, %c0_i32_0 : i32, i32, i32
  }
}

</mosaic_0001>

<llo_original>
// kernel: tpu_custom_call.1
$region0: #{tpu_custom_call.1}
  #allocation0 [shape = 'u32[]', space=smem, size = 0x4, offset = 0x4, fixed_abs, tag = 'smem constant byte address 0x4 - core index']
  #allocation1 [shape = 'u32[144,128]{1,0:T(1,128)}', space=vmem, size = 0x12000, scoped, tag = 'internal scratch']
  #allocation2 [shape = 'bf16[8,64]{1,0:T(8,128)(2,1)}', space=vmem, size = 0x800, scoped, tag = 'scratch operand']
  %s0 = inlined_call_operand.hbm [shape: f32[2,8,300], index: 0, kind: input, shape index: {}]
  %s1 = inlined_call_operand.hbm [shape: bf16[300,256], index: 1, kind: input, shape index: {}]
  %s2 = inlined_call_operand.vmem [shape: f32[1,256], index: 2, kind: input, shape index: {}]
  %s3 = inlined_call_operand.hbm [shape: bf16[64,300], index: 3, kind: input, shape index: {}]
  %s4 = inlined_call_operand.vmem [shape: f32[1,300], index: 4, kind: input, shape index: {}]
  %s5 = inlined_call_operand.hbm [shape: f32[2,8,300], index: 5, kind: output, shape index: {}]
  %s6 = sld [smem:[#allocation0]]
  $region65: #{tpu_custom_call.1} parent=0
    _
  %s8 = ssub.s32 1, %s6
  %s9 = scalar_select 0, %s8, %s6
  $region1: #{tpu_custom_call.1} parent=0
    #allocation3 [shape = 'u8[24576]{0}', space=vmem, size = 0x6000, scoped, tag = 'input window, operand 0']
    #allocation4 [shape = 's32[2]{0}', space=sflag, size = 0x8, scoped, tag = 'scoped memory for tpu_custom_call.1']
    #allocation5 [shape = 's32[2]{0}', space=sflag, size = 0x8, scoped, tag = 'scoped memory for tpu_custom_call.1']
    #allocation6 [shape = 'u8[155648]{0}', space=vmem, size = 0x26000, scoped, tag = 'input window, operand 1, single buffered']
    #allocation7 [shape = 's32[1]{0}', space=sflag, size = 0x4, scoped, tag = 'scoped memory for tpu_custom_call.1']
    #allocation8 [shape = 'u8[49152]{0}', space=vmem, size = 0xc000, scoped, tag = 'input window, operand 3, single buffered']
    #allocation9 [shape = 'u8[24576]{0}', space=vmem, size = 0x6000, scoped, tag = 'output window, operand 0']
    %10 = vsyncpa [#allocation4], 0
    %s11 = scalar_lea.sflag [#allocation4], 1
    %12 = vsyncpa %s11, 0
    %13 = vsyncpa [#allocation7], 0
    %14 = vsyncpa [#allocation5], 0
    %s15 = scalar_lea.sflag [#allocation5], 1
    %16 = vsyncpa %s15, 0
    loop: start=0, step=1, limit=4
    $region2: #{tpu_custom_call.1} parent=1 // loop_pre_header
      _
    $region3: #{tpu_custom_call.1} parent=1 // loop_header
      %s18 = sphi 0, %s22
      %p19 = scmp.ge.s32.totalorder %s18, 4
      %s28 = sphi 0, %s30
      %s31 = sphi 0, %s28
      %s32 = sphi 0, %s31
      %s48 = sphi 0, %s32
      %s52 = sphi 0, %s52
      %s54 = sphi 0, %s52
      %s55 = sphi 0, %s54
      %s69 = sphi 0, %s55
      %s73 = sphi 0, %s73
      %s75 = sphi 0, %s73
      %s76 = sphi 0, %s75
      %s90 = sphi 0, %s76
      %s94 = sphi 0, %s94
      %s96 = sphi 0, %s94
      %s97 = sphi 0, %s96
      %s111 = sphi 0, %s97
      %s115 = sphi 0, %s115
      %s117 = sphi 0, %s115
      %s118 = sphi 0, %s117
      %s132 = sphi 0, %s118
      %s138 = sphi 0, %s140
      %s141 = sphi 0, %s138
      %s142 = sphi 0, %s141
      %s158 = sphi 0, %s142
    $region4: #{tpu_custom_call.1} parent=1 // loop_header_branch
      %21 = sbr.rel (%p19) target = $region8
    $region5: #{tpu_custom_call.1} parent=1 // loop_body
      %s23 = ssub.s32 %s18, 1
      %s24 = ssub.s32 %s18, 2
      %s25 = sadd.s32 %s18, 1
      %s26 = ssub.s32 %s18, %s25
      %p27 = scmp.eq.s32.totalorder %s26, 0
      %s29 = sadd.s32 %s28, 1
      %s30 = scalar_select %p27, %s28, %s29
      %p33 = pneg %p27
      %p34 = scmp.eq.s32.totalorder %s18, 1
      %p35 = por %p33, %p34
      %p36 = scmp.ne.s32.totalorder %s28, %s31
      %p37 = scmp.eq.s32.totalorder %s18, 0
      %p38 = por %p36, %p37
      %p39 = scmp.ne.s32.totalorder %s28, %s31
      %p40 = scmp.eq.s32.totalorder %s23, 1
      %p41 = por %p39, %p40
      %p42 = scmp.ne.s32.totalorder %s31, %s32
      %p43 = scmp.eq.s32.totalorder %s23, 0
      %p44 = por %p42, %p43
      %p45 = scmp.ne.s32.totalorder %s31, %s32
      %p46 = scmp.eq.s32.totalorder %s24, 1
      %p47 = por %p45, %p46
      %p49 = scmp.ne.s32.totalorder %s32, %s48
      %p50 = scmp.eq.s32.totalorder %s24, 0
      %p51 = por %p49, %p50
      %s53 = sadd.s32 %s52, 1
      %p56 = scmp.eq.s32.totalorder %s18, 1
      %p57 = scmp.ne.s32.totalorder %s52, %s54
      %p58 = scmp.eq.s32.totalorder %s18, 0
      %p59 = por %p57, %p58
      %p60 = scmp.ne.s32.totalorder %s52, %s54
      %p61 = scmp.eq.s32.totalorder %s23, 1
      %p62 = por %p60, %p61
      %p63 = scmp.ne.s32.totalorder %s54, %s55
      %p64 = scmp.eq.s32.totalorder %s23, 0
      %p65 = por %p63, %p64
      %p66 = scmp.ne.s32.totalorder %s54, %s55
      %p67 = scmp.eq.s32.totalorder %s24, 1
      %p68 = por %p66, %p67
      %p70 = scmp.ne.s32.totalorder %s55, %s69
      %p71 = scmp.eq.s32.totalorder %s24, 0
      %p72 = por %p70, %p71
      %s74 = sadd.s32 %s73, 1
      %p77 = scmp.eq.s32.totalorder %s18, 1
      %p78 = scmp.ne.s32.totalorder %s73, %s75
      %p79 = scmp.eq.s32.totalorder %s18, 0
      %p80 = por %p78, %p79
      %p81 = scmp.ne.s32.totalorder %s73, %s75
      %p82 = scmp.eq.s32.totalorder %s23, 1
      %p83 = por %p81, %p82
      %p84 = scmp.ne.s32.totalorder %s75, %s76
      %p85 = scmp.eq.s32.totalorder %s23, 0
      %p86 = por %p84, %p85
      %p87 = scmp.ne.s32.totalorder %s75, %s76
      %p88 = scmp.eq.s32.totalorder %s24, 1
      %p89 = por %p87, %p88
      %p91 = scmp.ne.s32.totalorder %s76, %s90
      %p92 = scmp.eq.s32.totalorder %s24, 0
      %p93 = por %p91, %p92
      %s95 = sadd.s32 %s94, 1
      %p98 = scmp.eq.s32.totalorder %s18, 1
      %p99 = scmp.ne.s32.totalorder %s94, %s96
      %p100 = scmp.eq.s32.totalorder %s18, 0
      %p101 = por %p99, %p100
      %p102 = scmp.ne.s32.totalorder %s94, %s96
      %p103 = scmp.eq.s32.totalorder %s23, 1
      %p104 = por %p102, %p103
      %p105 = scmp.ne.s32.totalorder %s96, %s97
      %p106 = scmp.eq.s32.totalorder %s23, 0
      %p107 = por %p105, %p106
      %p108 = scmp.ne.s32.totalorder %s96, %s97
      %p109 = scmp.eq.s32.totalorder %s24, 1
      %p110 = por %p108, %p109
      %p112 = scmp.ne.s32.totalorder %s97, %s111
      %p113 = scmp.eq.s32.totalorder %s24, 0
      %p114 = por %p112, %p113
      %s116 = sadd.s32 %s115, 1
      %p119 = scmp.eq.s32.totalorder %s18, 1
      %p120 = scmp.ne.s32.totalorder %s115, %s117
      %p121 = scmp.eq.s32.totalorder %s18, 0
      %p122 = por %p120, %p121
      %p123 = scmp.ne.s32.totalorder %s115, %s117
      %p124 = scmp.eq.s32.totalorder %s23, 1
      %p125 = por %p123, %p124
      %p126 = scmp.ne.s32.totalorder %s117, %s118
      %p127 = scmp.eq.s32.totalorder %s23, 0
      %p128 = por %p126, %p127
      %p129 = scmp.ne.s32.totalorder %s117, %s118
      %p130 = scmp.eq.s32.totalorder %s24, 1
      %p131 = por %p129, %p130
      %p133 = scmp.ne.s32.totalorder %s118, %s132
      %p134 = scmp.eq.s32.totalorder %s24, 0
      %p135 = por %p133, %p134
      %s136 = ssub.s32 %s18, %s25
      %p137 = scmp.eq.s32.totalorder %s136, 0
      %s139 = sadd.s32 %s138, 1
      %s140 = scalar_select %p137, %s138, %s139
      %p143 = pneg %p137
      %p144 = scmp.eq.s32.totalorder %s18, 1
      %p145 = por %p143, %p144
      %p146 = scmp.ne.s32.totalorder %s138, %s141
      %p147 = scmp.eq.s32.totalorder %s18, 0
      %p148 = por %p146, %p147
      %p149 = scmp.ne.s32.totalorder %s138, %s141
      %p150 = scmp.eq.s32.totalorder %s23, 1
      %p151 = por %p149, %p150
      %p152 = scmp.ne.s32.totalorder %s141, %s142
      %p153 = scmp.eq.s32.totalorder %s23, 0
      %p154 = por %p152, %p153
      %p155 = scmp.ne.s32.totalorder %s141, %s142
      %p156 = scmp.eq.s32.totalorder %s24, 1
      %p157 = por %p155, %p156
      %p159 = scmp.ne.s32.totalorder %s142, %s158
      %p160 = scmp.eq.s32.totalorder %s24, 0
      %p161 = por %p159, %p160
      %p162 = scmp.le.s32.totalorder 1, %s18
      %p163 = scmp.lt.s32.totalorder %s18, 3
      %p164 = pnand %p162, %p163
      %p165 = pneg %p164
      // Predicated region
      $region9: #{tpu_custom_call.1} parent=5 // pred_check
        _
      $region10: #{tpu_custom_call.1} parent=5 // pred_check_branch
        %167 = sbr.rel (%p164) target = $region12
      $region11: #{tpu_custom_call.1} parent=5 // pred_region
        %s168 = ssub.s32 %s18, 1
        // Predicated region
        $region13: #{tpu_custom_call.1} parent=11 // pred_check
          %p169 = pneg %p65
        $region14: #{tpu_custom_call.1} parent=11 // pred_check_branch
          %171 = sbr.rel (%p169) target = $region16
        $region15: #{tpu_custom_call.1} parent=11 // pred_region
          %s173 = ssub.s32 4864, 4864
          %174 = vsyncadd [#allocation7], %s173
          %s175 = sshll.u32 [#allocation6], 4
          %s176 = int_to_ptr.vmem [resolvable:$true] %s175
          %181 = dma.hbm_to_vmem [thread:$0]  %s1, 4864, %s176, [#allocation7], 128, 128, 8
        $region16: #{tpu_custom_call.1} parent=11 // pred_fallthru
          _
        // Predicated region
        $region17: #{tpu_custom_call.1} parent=11 // pred_check
          %p182 = pneg %p86
        $region18: #{tpu_custom_call.1} parent=11 // pred_check_branch
          %184 = sbr.rel (%p182) target = $region20
        $region19: #{tpu_custom_call.1} parent=11 // pred_region
          _
        $region20: #{tpu_custom_call.1} parent=11 // pred_fallthru
          _
        // Predicated region
        $region21: #{tpu_custom_call.1} parent=11 // pred_check
          %p185 = pneg %p107
        $region22: #{tpu_custom_call.1} parent=11 // pred_check_branch
          %187 = sbr.rel (%p185) target = $region24
        $region23: #{tpu_custom_call.1} parent=11 // pred_region
          %s189 = ssub.s32 1536, 1536
          %190 = vsyncadd [#allocation7], %s189
          %s191 = sshll.u32 [#allocation8], 4
          %s192 = int_to_ptr.vmem [resolvable:$true] %s191
          %197 = dma.hbm_to_vmem [thread:$0]  %s3, 1536, %s192, [#allocation7], 192, 192, 12
        $region24: #{tpu_custom_call.1} parent=11 // pred_fallthru
          _
        // Predicated region
        $region25: #{tpu_custom_call.1} parent=11 // pred_check
          %p198 = pneg %p128
        $region26: #{tpu_custom_call.1} parent=11 // pred_check_branch
          %200 = sbr.rel (%p198) target = $region28
        $region27: #{tpu_custom_call.1} parent=11 // pred_region
          _
        $region28: #{tpu_custom_call.1} parent=11 // pred_fallthru
          _
      $region12: #{tpu_custom_call.1} parent=5 // pred_fallthru
        _
      %p201 = scmp.lt.s32.totalorder %s18, 2
      // Predicated region
      $region29: #{tpu_custom_call.1} parent=5 // pred_check
        %p202 = pneg %p201
      $region30: #{tpu_custom_call.1} parent=5 // pred_check_branch
        %204 = sbr.rel (%p202) target = $region32
      $region31: #{tpu_custom_call.1} parent=5 // pred_region
        // Predicated region
        $region33: #{tpu_custom_call.1} parent=31 // pred_check
          %p205 = pneg %p38
        $region34: #{tpu_custom_call.1} parent=31 // pred_check_branch
          %207 = sbr.rel (%p205) target = $region36
        $region35: #{tpu_custom_call.1} parent=31 // pred_region
          %s208 = sand.u32 %s28, 1
          %s209 = scalar_lea.sflag [#allocation4], %s208
          %s210 = sand.u32 %s28, 1
          %s211 = smul.addr %s210, 24
          %s212 = scalar_lea.vmem [#allocation3], %s211
          %s214 = ssub.s32 384, 384
          %215 = vsyncadd %s209, %s214
          %s216 = smul.addr %s18, 3
          %s217 = smul.addr %s216, 128
          %s218 = scalar_lea.hbm %s0, %s217
          %s220 = sshll.u32 %s212, 4
          %s221 = int_to_ptr.vmem [resolvable:$true] %s220
          %223 = dma.hbm_to_vmem [thread:$0]  %s218, 384, %s221, %s209
        $region36: #{tpu_custom_call.1} parent=31 // pred_fallthru
          _
      $region32: #{tpu_custom_call.1} parent=5 // pred_fallthru
        _
      %p224 = scmp.le.s32.totalorder 1, %s18
      %p225 = scmp.lt.s32.totalorder %s18, 3
      %p226 = pnand %p224, %p225
      %p227 = pneg %p226
      // Predicated region
      $region37: #{tpu_custom_call.1} parent=5 // pred_check
        _
      $region38: #{tpu_custom_call.1} parent=5 // pred_check_branch
        %229 = sbr.rel (%p226) target = $region40
      $region39: #{tpu_custom_call.1} parent=5 // pred_region
        %s230 = ssub.s32 %s18, 1
        %s231 = sand.u32 %s31, 1
        %s232 = scalar_lea.sflag [#allocation4], %s231
        %s233 = sand.u32 %s31, 1
        %s234 = smul.addr %s233, 24
        %s235 = scalar_lea.vmem [#allocation3], %s234
        // Predicated region
        $region41: #{tpu_custom_call.1} parent=39 // pred_check
          %p236 = pneg %p44
        $region42: #{tpu_custom_call.1} parent=39 // pred_check_branch
          %238 = sbr.rel (%p236) target = $region44
        $region43: #{tpu_custom_call.1} parent=39 // pred_region
          %239 = dma.done %s232, 384
        $region44: #{tpu_custom_call.1} parent=39 // pred_fallthru
          _
        // Predicated region
        $region45: #{tpu_custom_call.1} parent=39 // pred_check
          %p240 = pneg %p65
        $region46: #{tpu_custom_call.1} parent=39 // pred_check_branch
          %242 = sbr.rel (%p240) target = $region48
        $region47: #{tpu_custom_call.1} parent=39 // pred_region
          %243 = dma.done [#allocation7], 4864
        $region48: #{tpu_custom_call.1} parent=39 // pred_fallthru
          _
        // Predicated region
        $region49: #{tpu_custom_call.1} parent=39 // pred_check
          %p244 = pneg %p107
        $region50: #{tpu_custom_call.1} parent=39 // pred_check_branch
          %246 = sbr.rel (%p244) target = $region52
        $region51: #{tpu_custom_call.1} parent=39 // pred_region
          %247 = dma.done [#allocation7], 1536
        $region52: #{tpu_custom_call.1} parent=39 // pred_fallthru
          _
        %s248 = sand.u32 %s31, 1
        %s249 = scalar_lea.sflag [#allocation4], %s248
        %s250 = sand.u32 %s31, 1
        %s251 = smul.addr %s250, 24
        %s252 = scalar_lea.vmem [#allocation3], %s251
        %p253 = pneg %p44
        %p254 = pneg %p41
        %p255 = pneg %p65
        %p256 = pneg %p62
        %p257 = pneg %p86
        %p258 = pneg %p83
        %p259 = pneg %p107
        %p260 = pneg %p104
        %p261 = pneg %p128
        %p262 = pneg %p125
        %p263 = pneg %p154
        %p264 = pneg %p151
        %s265 = sand.u32 %s141, 1
        %s266 = scalar_lea.sflag [#allocation5], %s265
        %s267 = sand.u32 %s141, 1
        %s268 = smul.addr %s267, 24
        %s269 = scalar_lea.vmem [#allocation9], %s268
        %v271 = vld [vmem:[%s235] sm:$0xff]
        %v272 = vld [vmem:[%s235 + $0x8] sm:$0xff]
        %v273 = vld [vmem:[%s235 + $0x10] sm:$0xff]
        %v274 = vpack.c.bf16 %v271, %v271
        %v275 = vpack.c.bf16 %v272, %v272
        %v276 = vpack.c.bf16 %v273, %v273
        %v277 = vld [vmem:[#allocation6] sm:$0xff]
        %v278 = vld [vmem:[#allocation6 + $0x8] sm:$0xff]
        %v279 = vld [vmem:[#allocation6 + $0x10] sm:$0xff]
        %v280 = vld [vmem:[#allocation6 + $0x18] sm:$0xff]
        %v281 = vld [vmem:[#allocation6 + $0x20] sm:$0xff]
        %v282 = vld [vmem:[#allocation6 + $0x28] sm:$0xff]
        %v283 = vld [vmem:[#allocation6 + $0x30] sm:$0xff]
        %v284 = vld [vmem:[#allocation6 + $0x38] sm:$0xff]
        %v285 = vld [vmem:[#allocation6 + $0x40] sm:$0xff]
        %v286 = vld [vmem:[#allocation6 + $0x48] sm:$0xff]
        %v287 = vld [vmem:[#allocation6 + $0x50] sm:$0xff]
        %v288 = vld [vmem:[#allocation6 + $0x58] sm:$0xff]
        %v289 = vld [vmem:[#allocation6 + $0x60] sm:$0xff]
        %v290 = vld [vmem:[#allocation6 + $0x68] sm:$0xff]
        %v291 = vld [vmem:[#allocation6 + $0x70] sm:$0xff]
        %v292 = vld [vmem:[#allocation6 + $0x78] sm:$0xff]
        %v293 = vld [vmem:[#allocation6 + $0x80] sm:$0xff]
        %v294 = vld [vmem:[#allocation6 + $0x88] sm:$0xff]
        %v295 = vld [vmem:[#allocation6 + $0x90] sm:$0xff]
        %v296 = vld [vmem:[#allocation6 + $0x98] sm:$0xff]
        %v297 = vld [vmem:[#allocation6 + $0xa0] sm:$0xff]
        %v298 = vld [vmem:[#allocation6 + $0xa8] sm:$0xff]
        %v299 = vld [vmem:[#allocation6 + $0xb0] sm:$0xff]
        %v300 = vld [vmem:[#allocation6 + $0xb8] sm:$0xff]
        %v301 = vld [vmem:[#allocation6 + $0xc0] sm:$0xff]
        %v302 = vld [vmem:[#allocation6 + $0xc8] sm:$0xff]
        %v303 = vld [vmem:[#allocation6 + $0xd0] sm:$0xff]
        %v304 = vld [vmem:[#allocation6 + $0xd8] sm:$0xff]
        %v305 = vld [vmem:[#allocation6 + $0xe0] sm:$0xff]
        %v306 = vld [vmem:[#allocation6 + $0xe8] sm:$0xff]
        %v307 = vld [vmem:[#allocation6 + $0xf0] sm:$0xff]
        %v308 = vld [vmem:[#allocation6 + $0xf8] sm:$0xff]
        %v309 = vld [vmem:[#allocation6 + $0x100] sm:$0xff]
        %v310 = vld [vmem:[#allocation6 + $0x108] sm:$0xff]
        %v311 = vld [vmem:[#allocation6 + $0x110] sm:$0xff]
        %v312 = vld [vmem:[#allocation6 + $0x118] sm:$0xff]
        %v313 = vld [vmem:[#allocation6 + $0x120] sm:$0xff]
        %v314 = vld [vmem:[#allocation6 + $0x128] sm:$0x33]
        %v315 = vld [vmem:[%s2] sm:$0x3]
        %v317 = vlaneseq
        %v318 = vshrl.u32 %v317, 7
        %v319 = vsub.s32 0, %v318
        %v320 = vrot.slane %v315, %v319
        %v321 = vlaneseq
        %v322 = vshrl.u32 %v321, 7
        %v323 = vsub.s32 1, %v322
        %v324 = vrot.slane %v315, %v323
        %v365 = vunpack.c.l.b16 %v277
        %v366 = vunpack.c.h.b16 %v277
        %v367 = vunpack.c.l.b16 %v278
        %v368 = vunpack.c.h.b16 %v278
        %v369 = vunpack.c.l.b16 %v279
        %v370 = vunpack.c.h.b16 %v279
        %v371 = vunpack.c.l.b16 %v280
        %v372 = vunpack.c.h.b16 %v280
        %v373 = vunpack.c.l.b16 %v281
        %v374 = vunpack.c.h.b16 %v281
        %v375 = vunpack.c.l.b16 %v282
        %v376 = vunpack.c.h.b16 %v282
        %v377 = vunpack.c.l.b16 %v283
        %v378 = vunpack.c.h.b16 %v283
        %v379 = vunpack.c.l.b16 %v284
        %v380 = vunpack.c.h.b16 %v284
        %v381 = vunpack.c.l.b16 %v285
        %v382 = vunpack.c.h.b16 %v285
        %v383 = vunpack.c.l.b16 %v286
        %v384 = vunpack.c.h.b16 %v286
        %v385 = vunpack.c.l.b16 %v287
        %v386 = vunpack.c.h.b16 %v287
        %v387 = vunpack.c.l.b16 %v288
        %v388 = vunpack.c.h.b16 %v288
        %v389 = vunpack.c.l.b16 %v289
        %v390 = vunpack.c.h.b16 %v289
        %v391 = vunpack.c.l.b16 %v290
        %v392 = vunpack.c.h.b16 %v290
        %v393 = vunpack.c.l.b16 %v291
        %v394 = vunpack.c.h.b16 %v291
        %v395 = vunpack.c.l.b16 %v292
        %v396 = vunpack.c.h.b16 %v292
        %v397 = vunpack.c.l.b16 %v293
        %v398 = vunpack.c.h.b16 %v293
        %v399 = vunpack.c.l.b16 %v294
        %v400 = vunpack.c.h.b16 %v294
        %v401 = vunpack.c.l.b16 %v295
        %v402 = vunpack.c.h.b16 %v295
        %v403 = vunpack.c.l.b16 %v296
        %v404 = vunpack.c.h.b16 %v296
        %v405 = vunpack.c.l.b16 %v297
        %v406 = vunpack.c.h.b16 %v297
        %v407 = vunpack.c.l.b16 %v298
        %v408 = vunpack.c.h.b16 %v298
        %v409 = vunpack.c.l.b16 %v299
        %v410 = vunpack.c.h.b16 %v299
        %v411 = vunpack.c.l.b16 %v300
        %v412 = vunpack.c.h.b16 %v300
        %v413 = vunpack.c.l.b16 %v301
        %v414 = vunpack.c.h.b16 %v301
        %v415 = vunpack.c.l.b16 %v302
        %v416 = vunpack.c.h.b16 %v302
        %v417 = vunpack.c.l.b16 %v303
        %v418 = vunpack.c.h.b16 %v303
        %v419 = vunpack.c.l.b16 %v304
        %v420 = vunpack.c.h.b16 %v304
        %v421 = vunpack.c.l.b16 %v305
        %v422 = vunpack.c.h.b16 %v305
        %v423 = vunpack.c.l.b16 %v306
        %v424 = vunpack.c.h.b16 %v306
        %v425 = vunpack.c.l.b16 %v307
        %v426 = vunpack.c.h.b16 %v307
        %v427 = vunpack.c.l.b16 %v308
        %v428 = vunpack.c.h.b16 %v308
        %v429 = vunpack.c.l.b16 %v309
        %v430 = vunpack.c.h.b16 %v309
        %v431 = vunpack.c.l.b16 %v310
        %v432 = vunpack.c.h.b16 %v310
        %v433 = vunpack.c.l.b16 %v311
        %v434 = vunpack.c.h.b16 %v311
        %v435 = vunpack.c.l.b16 %v312
        %v436 = vunpack.c.h.b16 %v312
        %v437 = vunpack.c.l.b16 %v313
        %v438 = vunpack.c.h.b16 %v313
        %v439 = vunpack.c.l.b16 %v314
        %v440 = vunpack.c.h.b16 %v314
        %v441 = vpack.c.b16 %v367, %v365
        %v442 = vpack.c.b16 %v368, %v366
        %v443 = vpack.c.b16 %v371, %v369
        %v444 = vpack.c.b16 %v372, %v370
        %v445 = vpack.c.b16 %v375, %v373
        %v446 = vpack.c.b16 %v376, %v374
        %v447 = vpack.c.b16 %v379, %v377
        %v448 = vpack.c.b16 %v380, %v378
        %v449 = vpack.c.b16 %v383, %v381
        %v450 = vpack.c.b16 %v384, %v382
        %v451 = vpack.c.b16 %v387, %v385
        %v452 = vpack.c.b16 %v388, %v386
        %v453 = vpack.c.b16 %v391, %v389
        %v454 = vpack.c.b16 %v392, %v390
        %v455 = vpack.c.b16 %v395, %v393
        %v456 = vpack.c.b16 %v396, %v394
        %v457 = vpack.c.b16 %v399, %v397
        %v458 = vpack.c.b16 %v400, %v398
        %v459 = vpack.c.b16 %v403, %v401
        %v460 = vpack.c.b16 %v404, %v402
        %v461 = vpack.c.b16 %v407, %v405
        %v462 = vpack.c.b16 %v408, %v406
        %v463 = vpack.c.b16 %v411, %v409
        %v464 = vpack.c.b16 %v412, %v410
        %v465 = vpack.c.b16 %v415, %v413
        %v466 = vpack.c.b16 %v416, %v414
        %v467 = vpack.c.b16 %v419, %v417
        %v468 = vpack.c.b16 %v420, %v418
        %v469 = vpack.c.b16 %v423, %v421
        %v470 = vpack.c.b16 %v424, %v422
        %v471 = vpack.c.b16 %v427, %v425
        %v472 = vpack.c.b16 %v428, %v426
        %v473 = vpack.c.b16 %v431, %v429
        %v474 = vpack.c.b16 %v432, %v430
        %v475 = vpack.c.b16 %v435, %v433
        %v476 = vpack.c.b16 %v436, %v434
        %v477 = vpack.c.b16 %v439, %v437
        %v478 = vpack.c.b16 %v440, %v438
        %vm515 = vcmask 359424
        %v517 = vsel %vm515, %v276, 0
        %vm519 = vcmask 1045504
        %v521 = vsel %vm519, %v477, 0
        %v524 = vsel %vm519, %v478, 0
        %526 = vmatprep.subr.bf16.mxu0 %v442
        %527 = vmatpush1.bf16.msra.mxu0 %v441
        %528 = vmatprep.subr.bf16.mxu0 %v444
        %529 = vmatpush1.bf16.msra.mxu0 %v443
        %530 = vmatprep.subr.bf16.mxu0 %v446
        %531 = vmatpush1.bf16.msra.mxu0 %v445
        %532 = vmatprep.subr.bf16.mxu0 %v448
        %533 = vmatpush1.bf16.msra.mxu0 %v447
        %534 = vmatprep.subr.bf16.mxu0 %v450
        %535 = vmatpush1.bf16.msra.mxu0 %v449
        %536 = vmatprep.subr.bf16.mxu0 %v452
        %537 = vmatpush1.bf16.msra.mxu0 %v451
        %538 = vmatprep.subr.bf16.mxu0 %v454
        %539 = vmatpush1.bf16.msra.mxu0 %v453
        %540 = vmatprep.subr.bf16.mxu0 %v456
        %541 = vmatpush1.bf16.msra.mxu0 %v455
        %542 = vmatprep.subr.bf16.mxu0 %v458
        %543 = vmatpush1.bf16.msra.mxu0 %v457
        %544 = vmatprep.subr.bf16.mxu0 %v460
        %545 = vmatpush1.bf16.msra.mxu0 %v459
        %546 = vmatprep.subr.bf16.mxu0 %v462
        %547 = vmatpush1.bf16.msra.mxu0 %v461
        %548 = vmatprep.subr.bf16.mxu0 %v464
        %549 = vmatpush1.bf16.msra.mxu0 %v463
        %550 = vmatprep.subr.bf16.mxu0 %v466
        %551 = vmatpush1.bf16.msra.mxu0 %v465
        %552 = vmatprep.subr.bf16.mxu0 %v468
        %553 = vmatpush1.bf16.msra.mxu0 %v467
        %554 = vmatprep.subr.bf16.mxu0 %v470
        %555 = vmatpush1.bf16.msra.mxu0 %v469
        %556 = vmatprep.subr.bf16.mxu0 %v472
        %557 = vmatpush1.bf16.msra.mxu0 %v471
        %558 = vmatprep.mubr.bf16.mxu0 %v275
        %559 = vmatmul.mubr.bf16.gmra.mrb[0].mxu0 %v274
        %v560 = vpop.f32.mrb[0].mxu0
        %v561 = vadd.f32 %v320, %v560
        %v562 = vpop.f32.mrb[0].mxu0
        %v563 = vadd.f32 %v324, %v562
        %v564 = vpop.f32.mrb[0].mxu0
        %v565 = vpop.f32.mrb[0].mxu0
        %566 = vdwg.mxu0
        %567 = vmatprep.subr.bf16.mxu0 %v474
        %568 = vmatpush1.bf16.msra.mxu0 %v473
        %569 = vmatprep.subr.bf16.mxu0 %v476
        %570 = vmatpush1.bf16.msra.mxu0 %v475
        %571 = vmatprep.subr.bf16.mxu0 %v524
        %572 = vmatpush1.bf16.msra.mxu0 %v521
        %573 = vmatprep.subr.bf16.mxu0 0
        %574 = vmatpush1.bf16.msra.mxu0 0
        %575 = vmatprep.subr.bf16.mxu0 0
        %576 = vmatpush1.bf16.msra.mxu0 0
        %577 = vmatprep.subr.bf16.mxu0 0
        %578 = vmatpush1.bf16.msra.mxu0 0
        %579 = vmatprep.subr.bf16.mxu0 0
        %580 = vmatpush1.bf16.msra.mxu0 0
        %581 = vmatprep.subr.bf16.mxu0 0
        %582 = vmatpush1.bf16.msra.mxu0 0
        %583 = vmatprep.subr.bf16.mxu0 0
        %584 = vmatpush1.bf16.msra.mxu0 0
        %585 = vmatprep.subr.bf16.mxu0 0
        %586 = vmatpush1.bf16.msra.mxu0 0
        %587 = vmatprep.subr.bf16.mxu0 0
        %588 = vmatpush1.bf16.msra.mxu0 0
        %589 = vmatprep.subr.bf16.mxu0 0
        %590 = vmatpush1.bf16.msra.mxu0 0
        %591 = vmatprep.subr.bf16.mxu0 0
        %592 = vmatpush1.bf16.msra.mxu0 0
        %593 = vmatprep.subr.bf16.mxu0 0
        %594 = vmatpush1.bf16.msra.mxu0 0
        %595 = vmatprep.subr.bf16.mxu0 0
        %596 = vmatpush1.bf16.msra.mxu0 0
        %597 = vmatprep.subr.bf16.mxu0 0
        %598 = vmatpush1.bf16.msra.mxu0 0
        %599 = vmatprep.mubr.bf16.mxu0 0
        %600 = vmatmul.mubr.bf16.gmra.mrb[0].mxu0 %v517
        %v601 = vpop.f32.mrb[0].mxu0
        %v602 = vadd.f32 %v561, %v601
        %v603 = vpop.f32.mrb[0].mxu0
        %v604 = vadd.f32 %v563, %v603
        %v605 = vpop.f32.mrb[0].mxu0
        %v606 = vpop.f32.mrb[0].mxu0
        %607 = vdwg.mxu0
        %v608 = vpack.c.bf16 %v602, %v602
        %v609 = vpack.c.bf16 %v604, %v604
        %611 = vrot.lane.b32.xlu0 %v608, 64
        %v612 = vpop.permute.xlu0 %611
        %vm613 = vcmask 130048
        %v615 = vsel %vm613, %v608, 0
        %v618 = vsel %vm613, %v612, 0
        %620 = vmatprep.subr.bf16.mxu0 0
        %621 = vmatpush1.bf16.xpose.msra.mxu0 %v618
        %622 = vmatprep.subr.bf16.mxu0 0
        %623 = vmatpush1.bf16.xpose.msra.mxu0 0
        %624 = vmatprep.subr.bf16.mxu0 0
        %625 = vmatpush1.bf16.xpose.msra.mxu0 0
        %626 = vmatprep.subr.bf16.mxu0 0
        %627 = vmatpush1.bf16.xpose.msra.mxu0 0
        %628 = vmatprep.subr.bf16.mxu0 0
        %629 = vmatpush1.bf16.xpose.msra.mxu0 0
        %630 = vmatprep.subr.bf16.mxu0 0
        %631 = vmatpush1.bf16.xpose.msra.mxu0 0
        %632 = vmatprep.subr.bf16.mxu0 0
        %633 = vmatpush1.bf16.xpose.msra.mxu0 0
        %634 = vmatprep.subr.bf16.mxu0 0
        %635 = vmatpush1.bf16.xpose.msra.mxu0 0
        %636 = vmatprep.subr.bf16.mxu0 0
        %637 = vmatpush1.bf16.xpose.msra.mxu0 0
        %638 = vmatprep.subr.bf16.mxu0 0
        %639 = vmatpush1.bf16.xpose.msra.mxu0 0
        %640 = vmatprep.subr.bf16.mxu0 0
        %641 = vmatpush1.bf16.xpose.msra.mxu0 0
        %642 = vmatprep.subr.bf16.mxu0 0
        %643 = vmatpush1.bf16.xpose.msra.mxu0 0
        %644 = vmatprep.subr.bf16.mxu0 0
        %645 = vmatpush1.bf16.xpose.msra.mxu0 0
        %646 = vmatprep.subr.bf16.mxu0 0
        %647 = vmatpush1.bf16.xpose.msra.mxu0 0
        %648 = vmatprep.subr.bf16.mxu0 0
        %649 = vmatpush1.bf16.xpose.msra.mxu0 0
        %650 = vmatprep.subr.bf16.mxu0 0
        %651 = vmatpush1.bf16.xpose.msra.mxu0 0
        %652 = vmatprep.mubr.bf16.mxu0 0
        %653 = vmatmul.mubr.bf16.gmra.mrb[0].mxu0 %v615
        %v654 = vpop.f32.mrb[0].mxu0
        %v655 = vadd.f32 0.0, %v654
        %v656 = vpop.f32.mrb[0].mxu0
        %v657 = vpop.f32.mrb[0].mxu0
        %v658 = vpop.f32.mrb[0].mxu0
        %659 = vdwg.mxu0
        %vm660 = vcmask 64512
        %v661 = vsel %vm660, %v655, -inf
        %662 = vmax.xlane.f32.xlu0 %v661
        %v663 = vpop.xlane.xlu0 %662
        %v664 = vsub.f32 %v655, %v663
        %v665 = vmul.f32 %v664, 1.442695
        %v666 = vpow.pop %v665
        %v667 = vsel %vm660, %v666, 0.0
        %668 = vadd.xlane.f32.xlu0 %v667
        %v669 = vpop.xlane.xlu0 %668
        %v670 = vrcp.pop %v669
        %v671 = vmul.f32 %v666, %v670
        %v672 = vpack.c.bf16 %v671, %v671
        %v674 = vsel %vm660, %v672, 0
        %vm676 = vcmask 1043456
        %v678 = vsel %vm676, %v609, 0
        %680 = vmatprep.subr.bf16.mxu0 0
        %681 = vmatpush1.bf16.msra.mxu0 %v678
        %682 = vmatprep.subr.bf16.mxu0 0
        %683 = vmatpush1.bf16.msra.mxu0 0
        %684 = vmatprep.subr.bf16.mxu0 0
        %685 = vmatpush1.bf16.msra.mxu0 0
        %686 = vmatprep.subr.bf16.mxu0 0
        %687 = vmatpush1.bf16.msra.mxu0 0
        %688 = vmatprep.subr.bf16.mxu0 0
        %689 = vmatpush1.bf16.msra.mxu0 0
        %690 = vmatprep.subr.bf16.mxu0 0
        %691 = vmatpush1.bf16.msra.mxu0 0
        %692 = vmatprep.subr.bf16.mxu0 0
        %693 = vmatpush1.bf16.msra.mxu0 0
        %694 = vmatprep.subr.bf16.mxu0 0
        %695 = vmatpush1.bf16.msra.mxu0 0
        %696 = vmatprep.subr.bf16.mxu0 0
        %697 = vmatpush1.bf16.msra.mxu0 0
        %698 = vmatprep.subr.bf16.mxu0 0
        %699 = vmatpush1.bf16.msra.mxu0 0
        %700 = vmatprep.subr.bf16.mxu0 0
        %701 = vmatpush1.bf16.msra.mxu0 0
        %702 = vmatprep.subr.bf16.mxu0 0
        %703 = vmatpush1.bf16.msra.mxu0 0
        %704 = vmatprep.subr.bf16.mxu0 0
        %705 = vmatpush1.bf16.msra.mxu0 0
        %706 = vmatprep.subr.bf16.mxu0 0
        %707 = vmatpush1.bf16.msra.mxu0 0
        %708 = vmatprep.subr.bf16.mxu0 0
        %709 = vmatpush1.bf16.msra.mxu0 0
        %710 = vmatprep.subr.bf16.mxu0 0
        %711 = vmatpush1.bf16.msra.mxu0 0
        %712 = vmatprep.mubr.bf16.mxu0 0
        %713 = vmatmul.mubr.bf16.gmra.mrb[0].mxu0 %v674
        %v714 = vpop.f32.mrb[0].mxu0
        %v715 = vadd.f32 0.0, %v714
        %v716 = vpop.f32.mrb[0].mxu0
        %v717 = vpop.f32.mrb[0].mxu0
        %v718 = vpop.f32.mrb[0].mxu0
        %719 = vdwg.mxu0
        %v720 = vpack.c.bf16 %v715, %v715
        %vm721 = vcmask 125952
        %722 = vst.msk [vmem:[#allocation2] sm:$0xf] %vm721, %v720
        %723 = vrot.lane.b32.xlu0 %v608, 112
        %v724 = vpop.permute.xlu0 %723
        %725 = vrot.lane.b32.xlu0 %v608, 48
        %v726 = vpop.permute.xlu0 %725
        %v728 = vsel %vm613, %v724, 0
        %v731 = vsel %vm613, %v726, 0
        %733 = vmatprep.subr.bf16.mxu0 0
        %734 = vmatpush1.bf16.xpose.msra.mxu0 %v731
        %735 = vmatprep.subr.bf16.mxu0 0
        %736 = vmatpush1.bf16.xpose.msra.mxu0 0
        %737 = vmatprep.subr.bf16.mxu0 0
        %738 = vmatpush1.bf16.xpose.msra.mxu0 0
        %739 = vmatprep.subr.bf16.mxu0 0
        %740 = vmatpush1.bf16.xpose.msra.mxu0 0
        %741 = vmatprep.subr.bf16.mxu0 0
        %742 = vmatpush1.bf16.xpose.msra.mxu0 0
        %743 = vmatprep.subr.bf16.mxu0 0
        %744 = vmatpush1.bf16.xpose.msra.mxu0 0
        %745 = vmatprep.subr.bf16.mxu0 0
        %746 = vmatpush1.bf16.xpose.msra.mxu0 0
        %747 = vmatprep.subr.bf16.mxu0 0
        %748 = vmatpush1.bf16.xpose.msra.mxu0 0
        %749 = vmatprep.subr.bf16.mxu0 0
        %750 = vmatpush1.bf16.xpose.msra.mxu0 0
        %751 = vmatprep.subr.bf16.mxu0 0
        %752 = vmatpush1.bf16.xpose.msra.mxu0 0
        %753 = vmatprep.subr.bf16.mxu0 0
        %754 = vmatpush1.bf16.xpose.msra.mxu0 0
        %755 = vmatprep.subr.bf16.mxu0 0
        %756 = vmatpush1.bf16.xpose.msra.mxu0 0
        %757 = vmatprep.subr.bf16.mxu0 0
        %758 = vmatpush1.bf16.xpose.msra.mxu0 0
        %759 = vmatprep.subr.bf16.mxu0 0
        %760 = vmatpush1.bf16.xpose.msra.mxu0 0
        %761 = vmatprep.subr.bf16.mxu0 0
        %762 = vmatpush1.bf16.xpose.msra.mxu0 0
        %763 = vmatprep.subr.bf16.mxu0 0
        %764 = vmatpush1.bf16.xpose.msra.mxu0 0
        %765 = vmatprep.mubr.bf16.mxu0 0
        %766 = vmatmul.mubr.bf16.gmra.mrb[0].mxu0 %v728
        %v767 = vpop.f32.mrb[0].mxu0
        %v768 = vadd.f32 0.0, %v767
        %v769 = vpop.f32.mrb[0].mxu0
        %v770 = vpop.f32.mrb[0].mxu0
        %v771 = vpop.f32.mrb[0].mxu0
        %772 = vdwg.mxu0
        %v773 = vsel %vm660, %v768, -inf
        %774 = vmax.xlane.f32.xlu0 %v773
        %v775 = vpop.xlane.xlu0 %774
        %v776 = vsub.f32 %v768, %v775
        %v777 = vmul.f32 %v776, 1.442695
        %v778 = vpow.pop %v777
        %v779 = vsel %vm660, %v778, 0.0
        %780 = vadd.xlane.f32.xlu0 %v779
        %v781 = vpop.xlane.xlu0 %780
        %v782 = vrcp.pop %v781
        %v783 = vmul.f32 %v778, %v782
        %v784 = vpack.c.bf16 %v783, %v783
        %786 = vrot.lane.b32.xlu0 %v609, 112
        %v787 = vpop.permute.xlu0 %786
        %v789 = vsel %vm660, %v784, 0
        %v792 = vsel %vm676, %v787, 0
        %794 = vmatprep.subr.bf16.mxu0 0
        %795 = vmatpush1.bf16.msra.mxu0 %v792
        %796 = vmatprep.subr.bf16.mxu0 0
        %797 = vmatpush1.bf16.msra.mxu0 0
        %798 = vmatprep.subr.bf16.mxu0 0
        %799 = vmatpush1.bf16.msra.mxu0 0
        %800 = vmatprep.subr.bf16.mxu0 0
        %801 = vmatpush1.bf16.msra.mxu0 0
        %802 = vmatprep.subr.bf16.mxu0 0
        %803 = vmatpush1.bf16.msra.mxu0 0
        %804 = vmatprep.subr.bf16.mxu0 0
        %805 = vmatpush1.bf16.msra.mxu0 0
        %806 = vmatprep.subr.bf16.mxu0 0
        %807 = vmatpush1.bf16.msra.mxu0 0
        %808 = vmatprep.subr.bf16.mxu0 0
        %809 = vmatpush1.bf16.msra.mxu0 0
        %810 = vmatprep.subr.bf16.mxu0 0
        %811 = vmatpush1.bf16.msra.mxu0 0
        %812 = vmatprep.subr.bf16.mxu0 0
        %813 = vmatpush1.bf16.msra.mxu0 0
        %814 = vmatprep.subr.bf16.mxu0 0
        %815 = vmatpush1.bf16.msra.mxu0 0
        %816 = vmatprep.subr.bf16.mxu0 0
        %817 = vmatpush1.bf16.msra.mxu0 0
        %818 = vmatprep.subr.bf16.mxu0 0
        %819 = vmatpush1.bf16.msra.mxu0 0
        %820 = vmatprep.subr.bf16.mxu0 0
        %821 = vmatpush1.bf16.msra.mxu0 0
        %822 = vmatprep.subr.bf16.mxu0 0
        %823 = vmatpush1.bf16.msra.mxu0 0
        %824 = vmatprep.subr.bf16.mxu0 0
        %825 = vmatpush1.bf16.msra.mxu0 0
        %826 = vmatprep.mubr.bf16.mxu0 0
        %827 = vmatmul.mubr.bf16.gmra.mrb[0].mxu0 %v789
        %v828 = vpop.f32.mrb[0].mxu0
        %v829 = vadd.f32 0.0, %v828
        %v830 = vpop.f32.mrb[0].mxu0
        %v831 = vpop.f32.mrb[0].mxu0
        %v832 = vpop.f32.mrb[0].mxu0
        %833 = vdwg.mxu0
        %v834 = vpack.c.bf16 %v829, %v829
        %v836 = vunpack.c.l.b16 %v834
        %v837 = vpack.c.b16 %v836, %v836
        %838 = vrot.lane.b32.xlu0 %v837, 16
        %v839 = vpop.permute.xlu0 %838
        %vm841 = vcmask 257152
        %842 = vst.msk [vmem:[#allocation2] sm:$0xf] %vm841, %v839
        %843 = vrot.lane.b32.xlu0 %v608, 96
        %v844 = vpop.permute.xlu0 %843
        %845 = vrot.lane.b32.xlu0 %v608, 32
        %v846 = vpop.permute.xlu0 %845
        %v848 = vsel %vm613, %v844, 0
        %v851 = vsel %vm613, %v846, 0
        %853 = vmatprep.subr.bf16.mxu0 0
        %854 = vmatpush1.bf16.xpose.msra.mxu0 %v851
        %855 = vmatprep.subr.bf16.mxu0 0
        %856 = vmatpush1.bf16.xpose.msra.mxu0 0
        %857 = vmatprep.subr.bf16.mxu0 0
        %858 = vmatpush1.bf16.xpose.msra.mxu0 0
        %859 = vmatprep.subr.bf16.mxu0 0
        %860 = vmatpush1.bf16.xpose.msra.mxu0 0
        %861 = vmatprep.subr.bf16.mxu0 0
        %862 = vmatpush1.bf16.xpose.msra.mxu0 0
        %863 = vmatprep.subr.bf16.mxu0 0
        %864 = vmatpush1.bf16.xpose.msra.mxu0 0
        %865 = vmatprep.subr.bf16.mxu0 0
        %866 = vmatpush1.bf16.xpose.msra.mxu0 0
        %867 = vmatprep.subr.bf16.mxu0 0
        %868 = vmatpush1.bf16.xpose.msra.mxu0 0
        %869 = vmatprep.subr.bf16.mxu0 0
        %870 = vmatpush1.bf16.xpose.msra.mxu0 0
        %871 = vmatprep.subr.bf16.mxu0 0
        %872 = vmatpush1.bf16.xpose.msra.mxu0 0
        %873 = vmatprep.subr.bf16.mxu0 0
        %874 = vmatpush1.bf16.xpose.msra.mxu0 0
        %875 = vmatprep.subr.bf16.mxu0 0
        %876 = vmatpush1.bf16.xpose.msra.mxu0 0
        %877 = vmatprep.subr.bf16.mxu0 0
        %878 = vmatpush1.bf16.xpose.msra.mxu0 0
        %879 = vmatprep.subr.bf16.mxu0 0
        %880 = vmatpush1.bf16.xpose.msra.mxu0 0
        %881 = vmatprep.subr.bf16.mxu0 0
        %882 = vmatpush1.bf16.xpose.msra.mxu0 0
        %883 = vmatprep.subr.bf16.mxu0 0
        %884 = vmatpush1.bf16.xpose.msra.mxu0 0
        %885 = vmatprep.mubr.bf16.mxu0 0
        %886 = vmatmul.mubr.bf16.gmra.mrb[0].mxu0 %v848
        %v887 = vpop.f32.mrb[0].mxu0
        %v888 = vadd.f32 0.0, %v887
        %v889 = vpop.f32.mrb[0].mxu0
        %v890 = vpop.f32.mrb[0].mxu0
        %v891 = vpop.f32.mrb[0].mxu0
        %892 = vdwg.mxu0
        %v893 = vsel %vm660, %v888, -inf
        %894 = vmax.xlane.f32.xlu0 %v893
        %v895 = vpop.xlane.xlu0 %894
        %v896 = vsub.f32 %v888, %v895
        %v897 = vmul.f32 %v896, 1.442695
        %v898 = vpow.pop %v897
        %v899 = vsel %vm660, %v898, 0.0
        %900 = vadd.xlane.f32.xlu0 %v899
        %v901 = vpop.xlane.xlu0 %900
        %v902 = vrcp.pop %v901
        %v903 = vmul.f32 %v898, %v902
        %v904 = vpack.c.bf16 %v903, %v903
        %905 = vrot.lane.b32.xlu0 %v609, 96
        %v906 = vpop.permute.xlu0 %905
        %v908 = vsel %vm660, %v904, 0
        %v911 = vsel %vm676, %v906, 0
        %913 = vmatprep.subr.bf16.mxu0 0
        %914 = vmatpush1.bf16.msra.mxu0 %v911
        %915 = vmatprep.subr.bf16.mxu0 0
        %916 = vmatpush1.bf16.msra.mxu0 0
        %917 = vmatprep.subr.bf16.mxu0 0
        %918 = vmatpush1.bf16.msra.mxu0 0
        %919 = vmatprep.subr.bf16.mxu0 0
        %920 = vmatpush1.bf16.msra.mxu0 0
        %921 = vmatprep.subr.bf16.mxu0 0
        %922 = vmatpush1.bf16.msra.mxu0 0
        %923 = vmatprep.subr.bf16.mxu0 0
        %924 = vmatpush1.bf16.msra.mxu0 0
        %925 = vmatprep.subr.bf16.mxu0 0
        %926 = vmatpush1.bf16.msra.mxu0 0
        %927 = vmatprep.subr.bf16.mxu0 0
        %928 = vmatpush1.bf16.msra.mxu0 0
        %929 = vmatprep.subr.bf16.mxu0 0
        %930 = vmatpush1.bf16.msra.mxu0 0
        %931 = vmatprep.subr.bf16.mxu0 0
        %932 = vmatpush1.bf16.msra.mxu0 0
        %933 = vmatprep.subr.bf16.mxu0 0
        %934 = vmatpush1.bf16.msra.mxu0 0
        %935 = vmatprep.subr.bf16.mxu0 0
        %936 = vmatpush1.bf16.msra.mxu0 0
        %937 = vmatprep.subr.bf16.mxu0 0
        %938 = vmatpush1.bf16.msra.mxu0 0
        %939 = vmatprep.subr.bf16.mxu0 0
        %940 = vmatpush1.bf16.msra.mxu0 0
        %941 = vmatprep.subr.bf16.mxu0 0
        %942 = vmatpush1.bf16.msra.mxu0 0
        %943 = vmatprep.subr.bf16.mxu0 0
        %944 = vmatpush1.bf16.msra.mxu0 0
        %945 = vmatprep.mubr.bf16.mxu0 0
        %946 = vmatmul.mubr.bf16.gmra.mrb[0].mxu0 %v908
        %v947 = vpop.f32.mrb[0].mxu0
        %v948 = vadd.f32 0.0, %v947
        %v949 = vpop.f32.mrb[0].mxu0
        %v950 = vpop.f32.mrb[0].mxu0
        %v951 = vpop.f32.mrb[0].mxu0
        %952 = vdwg.mxu0
        %v953 = vpack.c.bf16 %v948, %v948
        %v955 = vunpack.c.l.b16 %v953
        %v956 = vpack.c.b16 %v955, %v955
        %957 = vrot.lane.b32.xlu0 %v956, 32
        %v958 = vpop.permute.xlu0 %957
        %vm960 = vcmask 388352
        %961 = vst.msk [vmem:[#allocation2] sm:$0xf] %vm960, %v958
        %962 = vrot.lane.b32.xlu0 %v608, 80
        %v963 = vpop.permute.xlu0 %962
        %964 = vrot.lane.b32.xlu0 %v608, 16
        %v965 = vpop.permute.xlu0 %964
        %v967 = vsel %vm613, %v963, 0
        %v970 = vsel %vm613, %v965, 0
        %972 = vmatprep.subr.bf16.mxu0 0
        %973 = vmatpush1.bf16.xpose.msra.mxu0 %v970
        %974 = vmatprep.subr.bf16.mxu0 0
        %975 = vmatpush1.bf16.xpose.msra.mxu0 0
        %976 = vmatprep.subr.bf16.mxu0 0
        %977 = vmatpush1.bf16.xpose.msra.mxu0 0
        %978 = vmatprep.subr.bf16.mxu0 0
        %979 = vmatpush1.bf16.xpose.msra.mxu0 0
        %980 = vmatprep.subr.bf16.mxu0 0
        %981 = vmatpush1.bf16.xpose.msra.mxu0 0
        %982 = vmatprep.subr.bf16.mxu0 0
        %983 = vmatpush1.bf16.xpose.msra.mxu0 0
        %984 = vmatprep.subr.bf16.mxu0 0
        %985 = vmatpush1.bf16.xpose.msra.mxu0 0
        %986 = vmatprep.subr.bf16.mxu0 0
        %987 = vmatpush1.bf16.xpose.msra.mxu0 0
        %988 = vmatprep.subr.bf16.mxu0 0
        %989 = vmatpush1.bf16.xpose.msra.mxu0 0
        %990 = vmatprep.subr.bf16.mxu0 0
        %991 = vmatpush1.bf16.xpose.msra.mxu0 0
        %992 = vmatprep.subr.bf16.mxu0 0
        %993 = vmatpush1.bf16.xpose.msra.mxu0 0
        %994 = vmatprep.subr.bf16.mxu0 0
        %995 = vmatpush1.bf16.xpose.msra.mxu0 0
        %996 = vmatprep.subr.bf16.mxu0 0
        %997 = vmatpush1.bf16.xpose.msra.mxu0 0
        %998 = vmatprep.subr.bf16.mxu0 0
        %999 = vmatpush1.bf16.xpose.msra.mxu0 0
        %1000 = vmatprep.subr.bf16.mxu0 0
        %1001 = vmatpush1.bf16.xpose.msra.mxu0 0
        %1002 = vmatprep.subr.bf16.mxu0 0
        %1003 = vmatpush1.bf16.xpose.msra.mxu0 0
        %1004 = vmatprep.mubr.bf16.mxu0 0
        %1005 = vmatmul.mubr.bf16.gmra.mrb[0].mxu0 %v967
        %v1006 = vpop.f32.mrb[0].mxu0
        %v1007 = vadd.f32 0.0, %v1006
        %v1008 = vpop.f32.mrb[0].mxu0
        %v1009 = vpop.f32.mrb[0].mxu0
        %v1010 = vpop.f32.mrb[0].mxu0
        %1011 = vdwg.mxu0
        %v1012 = vsel %vm660, %v1007, -inf
        %1013 = vmax.xlane.f32.xlu0 %v1012
        %v1014 = vpop.xlane.xlu0 %1013
        %v1015 = vsub.f32 %v1007, %v1014
        %v1016 = vmul.f32 %v1015, 1.442695
        %v1017 = vpow.pop %v1016
        %v1018 = vsel %vm660, %v1017, 0.0
        %1019 = vadd.xlane.f32.xlu0 %v1018
        %v1020 = vpop.xlane.xlu0 %1019
        %v1021 = vrcp.pop %v1020
        %v1022 = vmul.f32 %v1017, %v1021
        %v1023 = vpack.c.bf16 %v1022, %v1022
        %1024 = vrot.lane.b32.xlu0 %v609, 80
        %v1025 = vpop.permute.xlu0 %1024
        %v1027 = vsel %vm660, %v1023, 0
        %v1030 = vsel %vm676, %v1025, 0
        %1032 = vmatprep.subr.bf16.mxu0 0
        %1033 = vmatpush1.bf16.msra.mxu0 %v1030
        %1034 = vmatprep.subr.bf16.mxu0 0
        %1035 = vmatpush1.bf16.msra.mxu0 0
        %1036 = vmatprep.subr.bf16.mxu0 0
        %1037 = vmatpush1.bf16.msra.mxu0 0
        %1038 = vmatprep.subr.bf16.mxu0 0
        %1039 = vmatpush1.bf16.msra.mxu0 0
        %1040 = vmatprep.subr.bf16.mxu0 0
        %1041 = vmatpush1.bf16.msra.mxu0 0
        %1042 = vmatprep.subr.bf16.mxu0 0
        %1043 = vmatpush1.bf16.msra.mxu0 0
        %1044 = vmatprep.subr.bf16.mxu0 0
        %1045 = vmatpush1.bf16.msra.mxu0 0
        %1046 = vmatprep.subr.bf16.mxu0 0
        %1047 = vmatpush1.bf16.msra.mxu0 0
        %1048 = vmatprep.subr.bf16.mxu0 0
        %1049 = vmatpush1.bf16.msra.mxu0 0
        %1050 = vmatprep.subr.bf16.mxu0 0
        %1051 = vmatpush1.bf16.msra.mxu0 0
        %1052 = vmatprep.subr.bf16.mxu0 0
        %1053 = vmatpush1.bf16.msra.mxu0 0
        %1054 = vmatprep.subr.bf16.mxu0 0
        %1055 = vmatpush1.bf16.msra.mxu0 0
        %1056 = vmatprep.subr.bf16.mxu0 0
        %1057 = vmatpush1.bf16.msra.mxu0 0
        %1058 = vmatprep.subr.bf16.mxu0 0
        %1059 = vmatpush1.bf16.msra.mxu0 0
        %1060 = vmatprep.subr.bf16.mxu0 0
        %1061 = vmatpush1.bf16.msra.mxu0 0
        %1062 = vmatprep.subr.bf16.mxu0 0
        %1063 = vmatpush1.bf16.msra.mxu0 0
        %1064 = vmatprep.mubr.bf16.mxu0 0
        %1065 = vmatmul.mubr.bf16.gmra.mrb[0].mxu0 %v1027
        %v1066 = vpop.f32.mrb[0].mxu0
        %v1067 = vadd.f32 0.0, %v1066
        %v1068 = vpop.f32.mrb[0].mxu0
        %v1069 = vpop.f32.mrb[0].mxu0
        %v1070 = vpop.f32.mrb[0].mxu0
        %1071 = vdwg.mxu0
        %v1072 = vpack.c.bf16 %v1067, %v1067
        %v1074 = vunpack.c.l.b16 %v1072
        %v1075 = vpack.c.b16 %v1074, %v1074
        %1076 = vrot.lane.b32.xlu0 %v1075, 48
        %v1077 = vpop.permute.xlu0 %1076
        %vm1079 = vcmask 519552
        %1080 = vst.msk [vmem:[#allocation2] sm:$0xf] %vm1079, %v1077
        %v1081 = vld [vmem:[#allocation2] sm:$0xf]
        %v1082 = vld [vmem:[#allocation8] sm:$0xff]
        %v1083 = vld [vmem:[#allocation8 + $0x8] sm:$0xf]
        %v1084 = vld [vmem:[#allocation8 + $0xc] sm:$0xff]
        %v1085 = vld [vmem:[#allocation8 + $0x14] sm:$0xf]
        %v1086 = vld [vmem:[#allocation8 + $0x18] sm:$0xff]
        %v1087 = vld [vmem:[#allocation8 + $0x20] sm:$0xf]
        %v1088 = vld [vmem:[#allocation8 + $0x24] sm:$0xff]
        %v1089 = vld [vmem:[#allocation8 + $0x2c] sm:$0xf]
        %v1090 = vld [vmem:[#allocation8 + $0x30] sm:$0xff]
        %v1091 = vld [vmem:[#allocation8 + $0x38] sm:$0xf]
        %v1092 = vld [vmem:[#allocation8 + $0x3c] sm:$0xff]
        %v1093 = vld [vmem:[#allocation8 + $0x44] sm:$0xf]
        %v1094 = vld [vmem:[#allocation8 + $0x48] sm:$0xff]
        %v1095 = vld [vmem:[#allocation8 + $0x50] sm:$0xf]
        %v1096 = vld [vmem:[#allocation8 + $0x54] sm:$0xff]
        %v1097 = vld [vmem:[#allocation8 + $0x5c] sm:$0xf]
        %v1098 = vld [vmem:[%s4] sm:$0x7]
        %v1100 = vlaneseq
        %v1101 = vshrl.u32 %v1100, 7
        %v1102 = vsub.s32 0, %v1101
        %v1103 = vrot.slane %v1098, %v1102
        %v1104 = vlaneseq
        %v1105 = vshrl.u32 %v1104, 7
        %v1106 = vsub.s32 1, %v1105
        %v1107 = vrot.slane %v1098, %v1106
        %v1108 = vlaneseq
        %v1109 = vshrl.u32 %v1108, 7
        %v1110 = vsub.s32 2, %v1109
        %v1111 = vrot.slane %v1098, %v1110
        %v1131 = vunpack.c.l.b16 %v1082
        %v1132 = vunpack.c.h.b16 %v1082
        %v1133 = vunpack.c.l.b16 %v1083
        %v1134 = vunpack.c.l.b16 %v1084
        %v1135 = vunpack.c.h.b16 %v1084
        %v1136 = vunpack.c.l.b16 %v1085
        %v1137 = vunpack.c.l.b16 %v1086
        %v1138 = vunpack.c.h.b16 %v1086
        %v1139 = vunpack.c.l.b16 %v1087
        %v1140 = vunpack.c.l.b16 %v1088
        %v1141 = vunpack.c.h.b16 %v1088
        %v1142 = vunpack.c.l.b16 %v1089
        %v1143 = vunpack.c.l.b16 %v1090
        %v1144 = vunpack.c.h.b16 %v1090
        %v1145 = vunpack.c.l.b16 %v1091
        %v1146 = vunpack.c.l.b16 %v1092
        %v1147 = vunpack.c.h.b16 %v1092
        %v1148 = vunpack.c.l.b16 %v1093
        %v1149 = vunpack.c.l.b16 %v1094
        %v1150 = vunpack.c.h.b16 %v1094
        %v1151 = vunpack.c.l.b16 %v1095
        %v1152 = vunpack.c.l.b16 %v1096
        %v1153 = vunpack.c.h.b16 %v1096
        %v1154 = vunpack.c.l.b16 %v1097
        %v1155 = vpack.c.b16 %v1134, %v1131
        %v1156 = vpack.c.b16 %v1135, %v1132
        %v1157 = vpack.c.b16 %v1136, %v1133
        %v1158 = vpack.c.b16 %v1140, %v1137
        %v1159 = vpack.c.b16 %v1141, %v1138
        %v1160 = vpack.c.b16 %v1142, %v1139
        %v1161 = vpack.c.b16 %v1146, %v1143
        %v1162 = vpack.c.b16 %v1147, %v1144
        %v1163 = vpack.c.b16 %v1148, %v1145
        %v1164 = vpack.c.b16 %v1152, %v1149
        %v1165 = vpack.c.b16 %v1153, %v1150
        %v1166 = vpack.c.b16 %v1154, %v1151
        %vm1179 = vcmask 523264
        %v1181 = vsel %vm1179, %v1081, 0
        %1183 = vmatprep.subr.bf16.mxu0 %v1156
        %1184 = vmatpush1.bf16.msra.mxu0 %v1155
        %1185 = vmatprep.subr.bf16.mxu0 %v1159
        %1186 = vmatpush1.bf16.msra.mxu0 %v1158
        %1187 = vmatprep.subr.bf16.mxu0 %v1162
        %1188 = vmatpush1.bf16.msra.mxu0 %v1161
        %1189 = vmatprep.subr.bf16.mxu0 %v1165
        %1190 = vmatpush1.bf16.msra.mxu0 %v1164
        %1191 = vmatprep.subr.bf16.mxu0 0
        %1192 = vmatpush1.bf16.msra.mxu0 0
        %1193 = vmatprep.subr.bf16.mxu0 0
        %1194 = vmatpush1.bf16.msra.mxu0 0
        %1195 = vmatprep.subr.bf16.mxu0 0
        %1196 = vmatpush1.bf16.msra.mxu0 0
        %1197 = vmatprep.subr.bf16.mxu0 0
        %1198 = vmatpush1.bf16.msra.mxu0 0
        %1199 = vmatprep.subr.bf16.mxu0 0
        %1200 = vmatpush1.bf16.msra.mxu0 0
        %1201 = vmatprep.subr.bf16.mxu0 0
        %1202 = vmatpush1.bf16.msra.mxu0 0
        %1203 = vmatprep.subr.bf16.mxu0 0
        %1204 = vmatpush1.bf16.msra.mxu0 0
        %1205 = vmatprep.subr.bf16.mxu0 0
        %1206 = vmatpush1.bf16.msra.mxu0 0
        %1207 = vmatprep.subr.bf16.mxu0 0
        %1208 = vmatpush1.bf16.msra.mxu0 0
        %1209 = vmatprep.subr.bf16.mxu0 0
        %1210 = vmatpush1.bf16.msra.mxu0 0
        %1211 = vmatprep.subr.bf16.mxu0 0
        %1212 = vmatpush1.bf16.msra.mxu0 0
        %1213 = vmatprep.subr.bf16.mxu0 0
        %1214 = vmatpush1.bf16.msra.mxu0 0
        %1215 = vmatprep.mubr.bf16.mxu0 0
        %1216 = vmatmul.mubr.bf16.gmra.mrb[0].mxu0 %v1181
        %v1217 = vpop.f32.mrb[0].mxu0
        %v1218 = vadd.f32 %v1103, %v1217
        %v1219 = vpop.f32.mrb[0].mxu0
        %v1220 = vadd.f32 %v1107, %v1219
        %v1221 = vpop.f32.mrb[0].mxu0
        %v1222 = vpop.f32.mrb[0].mxu0
        %1223 = vdwg.mxu0
        %1224 = vmatprep.subr.bf16.mxu0 0
        %1225 = vmatpush1.bf16.msra.mxu0 %v1157
        %1226 = vmatprep.subr.bf16.mxu0 0
        %1227 = vmatpush1.bf16.msra.mxu0 %v1160
        %1228 = vmatprep.subr.bf16.mxu0 0
        %1229 = vmatpush1.bf16.msra.mxu0 %v1163
        %1230 = vmatprep.subr.bf16.mxu0 0
        %1231 = vmatpush1.bf16.msra.mxu0 %v1166
        %1232 = vmatprep.subr.bf16.mxu0 0
        %1233 = vmatpush1.bf16.msra.mxu0 0
        %1234 = vmatprep.subr.bf16.mxu0 0
        %1235 = vmatpush1.bf16.msra.mxu0 0
        %1236 = vmatprep.subr.bf16.mxu0 0
        %1237 = vmatpush1.bf16.msra.mxu0 0
        %1238 = vmatprep.subr.bf16.mxu0 0
        %1239 = vmatpush1.bf16.msra.mxu0 0
        %1240 = vmatprep.subr.bf16.mxu0 0
        %1241 = vmatpush1.bf16.msra.mxu0 0
        %1242 = vmatprep.subr.bf16.mxu0 0
        %1243 = vmatpush1.bf16.msra.mxu0 0
        %1244 = vmatprep.subr.bf16.mxu0 0
        %1245 = vmatpush1.bf16.msra.mxu0 0
        %1246 = vmatprep.subr.bf16.mxu0 0
        %1247 = vmatpush1.bf16.msra.mxu0 0
        %1248 = vmatprep.subr.bf16.mxu0 0
        %1249 = vmatpush1.bf16.msra.mxu0 0
        %1250 = vmatprep.subr.bf16.mxu0 0
        %1251 = vmatpush1.bf16.msra.mxu0 0
        %1252 = vmatprep.subr.bf16.mxu0 0
        %1253 = vmatpush1.bf16.msra.mxu0 0
        %1254 = vmatprep.subr.bf16.mxu0 0
        %1255 = vmatpush1.bf16.msra.mxu0 0
        %1256 = vmatprep.mubr.bf16.mxu0 0
        %1257 = vmatmul.mubr.bf16.gmra.mrb[0].mxu0 %v1181
        %v1258 = vpop.f32.mrb[0].mxu0
        %v1259 = vadd.f32 %v1111, %v1258
        %v1260 = vpop.f32.mrb[0].mxu0
        %v1261 = vpop.f32.mrb[0].mxu0
        %v1262 = vpop.f32.mrb[0].mxu0
        %1263 = vdwg.mxu0
        %1264 = vst [vmem:[%s269] sm:$0xff] %v1218
        %1265 = vst [vmem:[%s269 + $0x8] sm:$0xff] %v1220
        %1266 = vst.msk [vmem:[%s269 + $0x10] sm:$0xff] %vm515, %v1259
        %s1267 = sand.u32 %s141, 1
        %s1268 = scalar_lea.sflag [#allocation5], %s1267
        %s1269 = sand.u32 %s141, 1
        %s1270 = smul.addr %s1269, 24
        %s1271 = scalar_lea.vmem [#allocation9], %s1270
        // Predicated region
        $region53: #{tpu_custom_call.1} parent=39 // pred_check
          %p1272 = pneg %p151
        $region54: #{tpu_custom_call.1} parent=39 // pred_check_branch
          %1274 = sbr.rel (%p1272) target = $region56
        $region55: #{tpu_custom_call.1} parent=39 // pred_region
          %s1276 = ssub.s32 384, 384
          %1277 = vsyncadd %s1268, %s1276
          %s1278 = smul.addr %s23, 3
          %s1279 = smul.addr %s1278, 128
          %s1280 = scalar_lea.hbm %s5, %s1279
          %s1282 = sshll.u32 %s1271, 4
          %s1283 = int_to_ptr.vmem [resolvable:$true] %s1282
          %1285 = dma.vmem_to_hbm [thread:$0]  %s1283, 384, %s1280, %s1268
        $region56: #{tpu_custom_call.1} parent=39 // pred_fallthru
          _
      $region40: #{tpu_custom_call.1} parent=5 // pred_fallthru
        _
      %p1286 = scmp.le.s32.totalorder 2, %s18
      // Predicated region
      $region57: #{tpu_custom_call.1} parent=5 // pred_check
        %p1287 = pneg %p1286
      $region58: #{tpu_custom_call.1} parent=5 // pred_check_branch
        %1289 = sbr.rel (%p1287) target = $region60
      $region59: #{tpu_custom_call.1} parent=5 // pred_region
        %s1290 = ssub.s32 %s18, 2
        // Predicated region
        $region61: #{tpu_custom_call.1} parent=59 // pred_check
          %p1291 = pneg %p157
        $region62: #{tpu_custom_call.1} parent=59 // pred_check_branch
          %1293 = sbr.rel (%p1291) target = $region64
        $region63: #{tpu_custom_call.1} parent=59 // pred_region
          %s1294 = sand.u32 %s142, 1
          %s1295 = scalar_lea.sflag [#allocation5], %s1294
          %s1296 = sand.u32 %s142, 1
          %s1297 = smul.addr %s1296, 24
          %s1298 = scalar_lea.vmem [#allocation9], %s1297
          %1299 = dma.done %s1295, 384
        $region64: #{tpu_custom_call.1} parent=59 // pred_fallthru
          _
      $region60: #{tpu_custom_call.1} parent=5 // pred_fallthru
        _
    $region6: #{tpu_custom_call.1} parent=1 // loop_footer
      %s22 = sadd.s32 1, %s18
    $region7: #{tpu_custom_call.1} parent=1 // loop_footer_branch
      %17 = sbr.rel target = $region3
    $region8: #{tpu_custom_call.1} parent=1 // loop_exit
      _
    %1300 = vsyncpa [#allocation4], 1
    %s1301 = scalar_lea.sflag [#allocation4], 1
    %1302 = vsyncpa %s1301, 1
    %1303 = vsyncpa [#allocation7], 1
    %1304 = vsyncpa [#allocation5], 1
    %s1305 = scalar_lea.sflag [#allocation5], 1
    %1306 = vsyncpa %s1305, 1

</llo_original>
